<compile_context>
chip_gen: v7x
topology: tpu7x:2x2x1
jax: 0.10.0
libtpu: 0.0.40
codegen_flags: <defaults>
</compile_context>

<pallas_src>
import math

import jax
import jax.numpy as jnp
import numpy as np
from jax.experimental import pallas as pl
from jax.experimental.pallas import tpu as pltpu

N0, N1, N2, N3, N4 = 23, 11, 5, 2, 1


def _pad8(n):
    return ((n + 7) // 8) * 8


# ----------------------------------------------------------------------------
# Deterministic parameter construction (mirrors the nn.Module __init__ shapes).
# ----------------------------------------------------------------------------
def _linear(key, fin, fout):
    k1, k2 = jax.random.split(key)
    bound = 1.0 / math.sqrt(fin)
    w = jax.random.uniform(k1, (fout, fin), jnp.float32, minval=-bound, maxval=bound)
    b = jax.random.uniform(k2, (fout,), jnp.float32, minval=-bound, maxval=bound)
    return w, b


def make_params(key, in_features=3, out_features=3):
    ka, kp = jax.random.split(key)
    p = {}
    # torch inits A_k = I (learnable).  Perturb (keeping entries >= 0 so the
    # Laplacian normalization is well defined) so the test exercises real
    # graph mixing rather than near-identity Laplacians.
    for name, n, k in zip(["A0", "A1", "A2", "A3"], [N0, N1, N2, N3],
                          jax.random.split(ka, 4)):
        p[name] = jnp.eye(n, dtype=jnp.float32) + 0.2 * jax.random.uniform(k, (n, n))
    # A_4 exists in the torch module but is unused in forward().
    specs = [
        ("g1", in_features, 4), ("p1", 23, 11),
        ("g2", 4, 8),           ("p2", 11, 5),
        ("g3", 8, 16),          ("p3", 5, 2),
        ("g4", 16, 32),         ("p4", 2, 1),
        ("fc1", 32, 20),        ("fc2", 20, 32),
        ("up7", 1, 2),          ("g7", 64, 16),
        ("up8", 2, 5),          ("g8", 32, 8),
        ("up9", 5, 11),         ("g9", 16, 4),
        ("up10", 11, 23),       ("g10", 8, out_features),
    ]
    keys = jax.random.split(kp, len(specs))
    for k, (name, fin, fout) in zip(keys, specs):
        w, b = _linear(k, fin, fout)
        p[name + "_w"] = w  # torch nn.Linear convention: (out, in)
        p[name + "_b"] = b
    return p


# ----------------------------------------------------------------------------
# Wrapper-side operator fusion (all hoisted out of the kernel).
# ----------------------------------------------------------------------------
def _lap(A):
    # laplacian_batch with A identical across the batch:
    # D[j] = (sum_i A[i, j] + 1e-5) ** -0.5 ; L[i, j] = D[i] * A[i, j] * D[j]
    d = jax.lax.rsqrt(jnp.sum(A, axis=0) + 1e-5)
    return d[:, None] * A * d[None, :]


def _build_operands(P):
    """Kronecker-fuse every layer into one (out_rows, in_rows) matrix + bias col.

    Activations are flattened row-major, vec(X)[n*F + f] = X[n, f], one batch
    element per lane.  Pool/unpool layers fuse into the neighbouring gconv,
    decoder skip-concats become split weights.
    """
    f32 = jnp.float32
    kron = jnp.kron
    eye = lambda n: jnp.eye(n, dtype=f32)
    ones = lambda n: jnp.ones((n,), f32)

    L0, L1, L2, L3 = _lap(P["A0"]), _lap(P["A1"]), _lap(P["A2"]), _lap(P["A3"])
    Fin = P["g1_w"].shape[1]
    Fout = P["g10_w"].shape[0]

    W7, W8, W9, W10 = P["g7_w"], P["g8_w"], P["g9_w"], P["g10_w"]
    W7a, W7b = W7[:, :32], W7[:, 32:]
    W8a, W8b = W8[:, :16], W8[:, 16:]
    W9a, W9b = W9[:, :8], W9[:, 8:]
    W10a, W10b = W10[:, :4], W10[:, 4:]

    ops = {
        # ---- encoder (pool_k fused into gconv_{k+1}; pool4 fused into fc1) ----
        "E0": kron(L0, P["g1_w"]),                       # (92, 23*Fin)
        "E1": kron(L1 @ P["p1_w"], P["g2_w"]),           # (88, 92)
        "E2": kron(L2 @ P["p2_w"], P["g3_w"]),           # (80, 88)
        "E3": kron(L3 @ P["p3_w"], P["g4_w"]),           # (64, 80)
        "E4": P["fc1_w"] @ kron(P["p4_w"], eye(32)),     # (20, 64)
        "E5": P["fc2_w"],                                # (32, 20)
        # ---- decoder (skip half | unpool fused into the "new" half) ----
        "D7a": kron(L3, W7a),                            # (32, 64)
        "D7b": kron(L3 @ P["up7_w"], W7b),               # (32, 32)
        "D8a": kron(L2, W8a),                            # (40, 80)
        "D8b": kron(L2 @ P["up8_w"], W8b),               # (40, 32)
        "D9a": kron(L1, W9a),                            # (44, 88)
        "D9b": kron(L1 @ P["up9_w"], W9b),               # (44, 40)
        "D10a": kron(L0, W10a),                          # (23*Fout, 92)
        "D10b": kron(L0 @ P["up10_w"], W10b),            # (23*Fout, 44)
    }
    biases = {
        "c0": kron(ones(N0), P["g1_b"]),
        "c1": kron(L1, P["g2_w"]) @ kron(P["p1_b"], ones(4)) + kron(ones(N1), P["g2_b"]),
        "c2": kron(L2, P["g3_w"]) @ kron(P["p2_b"], ones(8)) + kron(ones(N2), P["g3_b"]),
        "c3": kron(L3, P["g4_w"]) @ kron(P["p3_b"], ones(16)) + kron(ones(N3), P["g4_b"]),
        "c4": P["fc1_w"] @ kron(P["p4_b"], ones(32)) + P["fc1_b"],
        "c5": P["fc2_b"],
        "c7": kron(L3, W7b) @ kron(P["up7_b"], ones(32)) + kron(ones(N3), P["g7_b"]),
        "c8": kron(L2, W8b) @ kron(P["up8_b"], ones(16)) + kron(ones(N2), P["g8_b"]),
        "c9": kron(L1, W9b) @ kron(P["up9_b"], ones(8)) + kron(ones(N1), P["g9_b"]),
        "c10": kron(L0, W10b) @ kron(P["up10_b"], ones(4)) + kron(ones(N0), P["g10_b"]),
    }

    # Padded (multiple-of-8) row count of each activation stage.  An operator's
    # columns are padded to the padded rows of the stage it consumes; padded
    # activation rows stay exactly zero through every ReLU stage.
    rows = {
        "in": _pad8(N0 * Fin), "v0": _pad8(23 * 4), "v1": 11 * 8, "v2": 5 * 16,
        "v3": 2 * 32, "g1": _pad8(20), "gf": 32, "v7": 2 * 16, "v8": 5 * 8,
        "v9": _pad8(11 * 4), "out": _pad8(N0 * Fout),
    }
    io = {   # op name -> (output stage, input stage)
        "E0": ("v0", "in"), "E1": ("v1", "v0"), "E2": ("v2", "v1"),
        "E3": ("v3", "v2"), "E4": ("g1", "v3"), "E5": ("gf", "g1"),
        "D7a": ("v7", "v3"), "D7b": ("v7", "gf"),
        "D8a": ("v8", "v2"), "D8b": ("v8", "v7"),
        "D9a": ("v9", "v1"), "D9b": ("v9", "v8"),
        "D10a": ("out", "v0"), "D10b": ("out", "v9"),
    }
    bias_stage = {"c0": "v0", "c1": "v1", "c2": "v2", "c3": "v3", "c4": "g1",
                  "c5": "gf", "c7": "v7", "c8": "v8", "c9": "v9", "c10": "out"}

    slab_w = ((max(rows.values()) + 127) // 128) * 128   # 128 for Fin,Fout <= 5

    # Pack operators row-wise into one lane-tile-wide slab: every block starts
    # at lane 0 and a multiple-of-8 row, so in-kernel slices are cheap views.
    op_parts, op_off, r = [], {}, 0
    for name in io:
        out_s, in_s = io[name]
        h, w = rows[out_s], rows[in_s]
        m = ops[name].astype(f32)
        m = jnp.pad(m, ((0, h - m.shape[0]), (0, slab_w - m.shape[1])))
        op_parts.append(m)
        op_off[name] = (r, h, w)
        r += h
    op_slab = jnp.concatenate(op_parts, axis=0)

    b_parts, b_off, r = [], {}, 0
    for name, st in bias_stage.items():
        h = rows[st]
        v = biases[name].astype(f32)
        b_parts.append(jnp.pad(v, (0, h - v.shape[0])).reshape(h, 1))
        b_off[name] = (r, h)
        r += h
    bias_slab = jnp.concatenate(b_parts, axis=0)

    return (op_slab, bias_slab), (op_off, b_off), (rows["in"], rows["out"])


# ----------------------------------------------------------------------------
# Pallas kernel: full GraphUNet forward for one batch tile (batch on lanes).
# ----------------------------------------------------------------------------
def _make_kernel(op_off, b_off):
    def kernel(x_ref, w_ref, b_ref, o_ref):
        def OP(n):                               # static, aligned slab slices
            r, h, w = op_off[n]
            return w_ref[r:r + h, 0:w]

        def BIAS(n):                             # (h, 1), lane-broadcast on add
            r, h = b_off[n]
            return b_ref[r:r + h, 0:1]

        def mm(a, b):
            return jnp.dot(a, b, preferred_element_type=jnp.float32)

        relu = lambda v: jnp.maximum(v, 0.0)

        x = x_ref[...]                                               # (R_in, BT)
        # ---- encoder (each step = fused pool + Laplacian + weight) ----
        v0 = relu(mm(OP("E0"), x) + BIAS("c0"))                      # (96, BT)
        v1 = relu(mm(OP("E1"), v0) + BIAS("c1"))                     # (88, BT)
        v2 = relu(mm(OP("E2"), v1) + BIAS("c2"))                     # (80, BT)
        v3 = relu(mm(OP("E3"), v2) + BIAS("c3"))                     # (64, BT)
        # ---- bottleneck MLP (pool4 fused into fc1) ----
        g1 = relu(mm(OP("E4"), v3) + BIAS("c4"))                     # (24, BT)
        gf = relu(mm(OP("E5"), g1) + BIAS("c5"))                     # (32, BT)
        # ---- decoder: skip half + (unpool fused) new half ----
        v7 = relu(mm(OP("D7a"), v3) + mm(OP("D7b"), gf) + BIAS("c7"))  # (32, BT)
        v8 = relu(mm(OP("D8a"), v2) + mm(OP("D8b"), v7) + BIAS("c8"))  # (40, BT)
        v9 = relu(mm(OP("D9a"), v1) + mm(OP("D9b"), v8) + BIAS("c9"))  # (48, BT)
        o_ref[...] = mm(OP("D10a"), v0) + mm(OP("D10b"), v9) + BIAS("c10")

    return kernel


# ----------------------------------------------------------------------------
# Wrapper: layout plumbing + pallas_call.
# ----------------------------------------------------------------------------
def graph_unet_forward(X, P, *, b_tile=128):
    """GraphUNet forward.  X: (B, 23, Fin) -> (B, 23, Fout).

    b_tile is the lane width per grid step; use 256 on v6e/v7x for full MXU
    width when the batch is large, and keep the number of blocks even on v7x
    so both TensorCores stay busy.
    """
    assert b_tile % 128 == 0, "b_tile must be a multiple of 128 (lane tile)"
    B, N, Fin = X.shape
    assert N == N0 and Fin == P["g1_w"].shape[1]
    Fout = P["g10_w"].shape[0]

    (op_slab, bias_slab), (op_off, b_off), (r_in, r_out) = _build_operands(P)
    kernel = _make_kernel(op_off, b_off)

    BT = b_tile
    n_blk = -(-B // BT)
    b_pad = n_blk * BT

    # Batch-on-lanes layout: column b holds vec_row(X[b]); rows zero-padded to
    # a multiple of 8.  Padded batch columns compute garbage (biases propagate
    # through) and are sliced off below — never reduce over the raw output.
    x_cols = jnp.pad(X.reshape(B, N0 * Fin).astype(jnp.float32),
                     ((0, b_pad - B), (0, r_in - N0 * Fin))).T        # (r_in, b_pad)

    flops = 2 * sum(h * w for (_, h, w) in op_off.values()) * b_pad
    bytes_accessed = 4 * (x_cols.size + op_slab.size + bias_slab.size + r_out * b_pad)

    out = pl.pallas_call(
        kernel,
        out_shape=jax.ShapeDtypeStruct((r_out, b_pad), jnp.float32),
        grid=(n_blk,),
        in_specs=[
            pl.BlockSpec((r_in, BT), lambda b: (0, b)),
            pl.BlockSpec(op_slab.shape, lambda b: (0, 0)),    # grid-invariant
            pl.BlockSpec(bias_slab.shape, lambda b: (0, 0)),  # grid-invariant
        ],
        out_specs=pl.BlockSpec((r_out, BT), lambda b: (0, b)),
        compiler_params=pltpu.CompilerParams(
            dimension_semantics=("parallel",)),
        cost_estimate=pl.CostEstimate(flops=flops, transcendentals=0,
                                      bytes_accessed=bytes_accessed),
    )(x_cols, op_slab, bias_slab)

    # (r_out, b_pad) -> (B, 23, Fout)
    return out[:N0 * Fout, :B].T.reshape(B, N0, Fout)


# ----------------------------------------------------------------------------
# Pure-JAX reference mirroring the PyTorch module exactly (for validation).
# ----------------------------------------------------------------------------
def ref_forward(X, P):
    def lap(A):
        d = jax.lax.rsqrt(jnp.sum(A, axis=0) + 1e-5)
        return d[:, None] * A * d[None, :]

    def gconv(Xb, A, W, b, act=True):
        h = jnp.einsum("ij,bjf->bif", lap(A), Xb)
        h = h @ W.T + b
        return jnp.maximum(h, 0.0) if act else h

    def pool(Xb, W, b):
        Xt = jnp.swapaxes(Xb, 1, 2)
        return jnp.swapaxes(Xt @ W.T + b, 1, 2)

    X0 = gconv(X, P["A0"], P["g1_w"], P["g1_b"])
    X1 = pool(X0, P["p1_w"], P["p1_b"])
    X1 = gconv(X1, P["A1"], P["g2_w"], P["g2_b"])
    X2 = pool(X1, P["p2_w"], P["p2_b"])
    X2 = gconv(X2, P["A2"], P["g3_w"], P["g3_b"])
    X3 = pool(X2, P["p3_w"], P["p3_b"])
    X3 = gconv(X3, P["A3"], P["g4_w"], P["g4_b"])
    X4 = pool(X3, P["p4_w"], P["p4_b"])
    gf = jnp.maximum(X4 @ P["fc1_w"].T + P["fc1_b"], 0.0)
    gf = jnp.maximum(gf @ P["fc2_w"].T + P["fc2_b"], 0.0)
    X7 = pool(gf, P["up7_w"], P["up7_b"])
    X7 = gconv(jnp.concatenate([X3, X7], axis=2), P["A3"], P["g7_w"], P["g7_b"])
    X8 = pool(X7, P["up8_w"], P["up8_b"])
    X8 = gconv(jnp.concatenate([X2, X8], axis=2), P["A2"], P["g8_w"], P["g8_b"])
    X9 = pool(X8, P["up9_w"], P["up9_b"])
    X9 = gconv(jnp.concatenate([X1, X9], axis=2), P["A1"], P["g9_w"], P["g9_b"])
    X10 = pool(X9, P["up10_w"], P["up10_b"])
    X10 = gconv(jnp.concatenate([X0, X10], axis=2), P["A0"], P["g10_w"], P["g10_b"],
                act=False)
    return X10


if __name__ == "__main__":
    key = jax.random.PRNGKey(0)
    kx, kp = jax.random.split(key)

    # B=200 exercises a 2-step grid (b_tile=128) plus batch padding.
    B, F_IN, F_OUT = 200, 3, 3
    X = jax.random.normal(kx, (B, N0, F_IN), dtype=jnp.float32)
    P = make_params(kp, in_features=F_IN, out_features=F_OUT)

    out = jax.block_until_ready(graph_unet_forward(X, P, b_tile=128))
    ref = jax.block_until_ready(ref_forward(X, P))
    np.testing.assert_allclose(np.asarray(out), np.asarray(ref), atol=1e-4, rtol=1e-4)

    print("KERNEL_OK")
</pallas_src>

<mosaic_0001>
module attributes {stable_mosaic.version = 11 : i64} {
  func.func @kernel(%arg0: i32, %arg1: memref<72x128xf32, #tpu.memory_space<vmem>>, %arg2: memref<768x128xf32, #tpu.memory_space<vmem>>, %arg3: memref<576x1xf32, #tpu.memory_space<vmem>>, %arg4: memref<72x128xf32, #tpu.memory_space<vmem>>) attributes {dimension_semantics = [#tpu.dimension_semantics<parallel>], iteration_bounds = array<i64: 2>, scalar_prefetch = 0 : i64, scratch_operands = 0 : i64, tpu.core_type = #tpu.core_type<tc>, window_params = [{transform_indices = @transform_0, window_bounds = array<i64: 72, 128>}, {pipeline_mode = #tpu.pipeline_mode<synchronous>, transform_indices = @transform_1, window_bounds = array<i64: 768, 128>}, {pipeline_mode = #tpu.pipeline_mode<synchronous>, transform_indices = @transform_2, window_bounds = array<i64: 576, 1>}, {transform_indices = @transform_3, window_bounds = array<i64: 72, 128>}]} {
    %c0 = arith.constant 0 : index
    %c0_0 = arith.constant 0 : index
    %0 = vector.load %arg1[%c0, %c0_0] : memref<72x128xf32, #tpu.memory_space<vmem>>, vector<72x128xf32>
    %c0_1 = arith.constant 0 : index
    %c0_2 = arith.constant 0 : index
    %1 = vector.load %arg2[%c0_1, %c0_2] : memref<768x128xf32, #tpu.memory_space<vmem>>, vector<96x72xf32>
    %cst = arith.constant dense<0.000000e+00> : vector<96x128xf32>
    %2 = tpu.matmul %1, %0, %cst {dimension_numbers = #tpu.dot_dimension_numbers<[1], [0], [0], [1], [0, 0, 1, 1], [], []>} : vector<96x72xf32>, vector<72x128xf32>, vector<96x128xf32> -> vector<96x128xf32>
    %c0_3 = arith.constant 0 : index
    %c0_4 = arith.constant 0 : index
    %3 = vector.load %arg3[%c0_3, %c0_4] : memref<576x1xf32, #tpu.memory_space<vmem>>, vector<96x1xf32>
    %4 = vector.broadcast %3 : vector<96x1xf32> to vector<96x128xf32>
    %5 = arith.addf %2, %4 : vector<96x128xf32>
    %cst_5 = arith.constant 0.000000e+00 : f32
    %6 = vector.broadcast %cst_5 : f32 to vector<96x128xf32>
    %7 = arith.maximumf %5, %6 : vector<96x128xf32>
    %c96 = arith.constant 96 : index
    %c0_6 = arith.constant 0 : index
    %8 = vector.load %arg2[%c96, %c0_6] : memref<768x128xf32, #tpu.memory_space<vmem>>, vector<88x96xf32>
    %cst_7 = arith.constant dense<0.000000e+00> : vector<88x128xf32>
    %9 = tpu.matmul %8, %7, %cst_7 {dimension_numbers = #tpu.dot_dimension_numbers<[1], [0], [0], [1], [0, 0, 1, 1], [], []>} : vector<88x96xf32>, vector<96x128xf32>, vector<88x128xf32> -> vector<88x128xf32>
    %c96_8 = arith.constant 96 : index
    %c0_9 = arith.constant 0 : index
    %10 = vector.load %arg3[%c96_8, %c0_9] : memref<576x1xf32, #tpu.memory_space<vmem>>, vector<88x1xf32>
    %11 = vector.broadcast %10 : vector<88x1xf32> to vector<88x128xf32>
    %12 = arith.addf %9, %11 : vector<88x128xf32>
    %cst_10 = arith.constant 0.000000e+00 : f32
    %13 = vector.broadcast %cst_10 : f32 to vector<88x128xf32>
    %14 = arith.maximumf %12, %13 : vector<88x128xf32>
    %c184 = arith.constant 184 : index
    %c0_11 = arith.constant 0 : index
    %15 = vector.load %arg2[%c184, %c0_11] : memref<768x128xf32, #tpu.memory_space<vmem>>, vector<80x88xf32>
    %cst_12 = arith.constant dense<0.000000e+00> : vector<80x128xf32>
    %16 = tpu.matmul %15, %14, %cst_12 {dimension_numbers = #tpu.dot_dimension_numbers<[1], [0], [0], [1], [0, 0, 1, 1], [], []>} : vector<80x88xf32>, vector<88x128xf32>, vector<80x128xf32> -> vector<80x128xf32>
    %c184_13 = arith.constant 184 : index
    %c0_14 = arith.constant 0 : index
    %17 = vector.load %arg3[%c184_13, %c0_14] : memref<576x1xf32, #tpu.memory_space<vmem>>, vector<80x1xf32>
    %18 = vector.broadcast %17 : vector<80x1xf32> to vector<80x128xf32>
    %19 = arith.addf %16, %18 : vector<80x128xf32>
    %cst_15 = arith.constant 0.000000e+00 : f32
    %20 = vector.broadcast %cst_15 : f32 to vector<80x128xf32>
    %21 = arith.maximumf %19, %20 : vector<80x128xf32>
    %c264 = arith.constant 264 : index
    %c0_16 = arith.constant 0 : index
    %22 = vector.load %arg2[%c264, %c0_16] : memref<768x128xf32, #tpu.memory_space<vmem>>, vector<64x80xf32>
    %cst_17 = arith.constant dense<0.000000e+00> : vector<64x128xf32>
    %23 = tpu.matmul %22, %21, %cst_17 {dimension_numbers = #tpu.dot_dimension_numbers<[1], [0], [0], [1], [0, 0, 1, 1], [], []>} : vector<64x80xf32>, vector<80x128xf32>, vector<64x128xf32> -> vector<64x128xf32>
    %c264_18 = arith.constant 264 : index
    %c0_19 = arith.constant 0 : index
    %24 = vector.load %arg3[%c264_18, %c0_19] : memref<576x1xf32, #tpu.memory_space<vmem>>, vector<64x1xf32>
    %25 = vector.broadcast %24 : vector<64x1xf32> to vector<64x128xf32>
    %26 = arith.addf %23, %25 : vector<64x128xf32>
    %cst_20 = arith.constant 0.000000e+00 : f32
    %27 = vector.broadcast %cst_20 : f32 to vector<64x128xf32>
    %28 = arith.maximumf %26, %27 : vector<64x128xf32>
    %c328 = arith.constant 328 : index
    %c0_21 = arith.constant 0 : index
    %29 = vector.load %arg2[%c328, %c0_21] : memref<768x128xf32, #tpu.memory_space<vmem>>, vector<24x64xf32>
    %cst_22 = arith.constant dense<0.000000e+00> : vector<24x128xf32>
    %30 = tpu.matmul %29, %28, %cst_22 {dimension_numbers = #tpu.dot_dimension_numbers<[1], [0], [0], [1], [0, 0, 1, 1], [], []>} : vector<24x64xf32>, vector<64x128xf32>, vector<24x128xf32> -> vector<24x128xf32>
    %c328_23 = arith.constant 328 : index
    %c0_24 = arith.constant 0 : index
    %31 = vector.load %arg3[%c328_23, %c0_24] : memref<576x1xf32, #tpu.memory_space<vmem>>, vector<24x1xf32>
    %32 = vector.broadcast %31 : vector<24x1xf32> to vector<24x128xf32>
    %33 = arith.addf %30, %32 : vector<24x128xf32>
    %cst_25 = arith.constant 0.000000e+00 : f32
    %34 = vector.broadcast %cst_25 : f32 to vector<24x128xf32>
    %35 = arith.maximumf %33, %34 : vector<24x128xf32>
    %c352 = arith.constant 352 : index
    %c0_26 = arith.constant 0 : index
    %36 = vector.load %arg2[%c352, %c0_26] : memref<768x128xf32, #tpu.memory_space<vmem>>, vector<32x24xf32>
    %cst_27 = arith.constant dense<0.000000e+00> : vector<32x128xf32>
    %37 = tpu.matmul %36, %35, %cst_27 {dimension_numbers = #tpu.dot_dimension_numbers<[1], [0], [0], [1], [0, 0, 1, 1], [], []>} : vector<32x24xf32>, vector<24x128xf32>, vector<32x128xf32> -> vector<32x128xf32>
    %c352_28 = arith.constant 352 : index
    %c0_29 = arith.constant 0 : index
    %38 = vector.load %arg3[%c352_28, %c0_29] : memref<576x1xf32, #tpu.memory_space<vmem>>, vector<32x1xf32>
    %39 = vector.broadcast %38 : vector<32x1xf32> to vector<32x128xf32>
    %40 = arith.addf %37, %39 : vector<32x128xf32>
    %cst_30 = arith.constant 0.000000e+00 : f32
    %41 = vector.broadcast %cst_30 : f32 to vector<32x128xf32>
    %42 = arith.maximumf %40, %41 : vector<32x128xf32>
    %c384 = arith.constant 384 : index
    %c0_31 = arith.constant 0 : index
    %43 = vector.load %arg2[%c384, %c0_31] : memref<768x128xf32, #tpu.memory_space<vmem>>, vector<32x64xf32>
    %cst_32 = arith.constant dense<0.000000e+00> : vector<32x128xf32>
    %44 = tpu.matmul %43, %28, %cst_32 {dimension_numbers = #tpu.dot_dimension_numbers<[1], [0], [0], [1], [0, 0, 1, 1], [], []>} : vector<32x64xf32>, vector<64x128xf32>, vector<32x128xf32> -> vector<32x128xf32>
    %c416 = arith.constant 416 : index
    %c0_33 = arith.constant 0 : index
    %45 = vector.load %arg2[%c416, %c0_33] : memref<768x128xf32, #tpu.memory_space<vmem>>, vector<32x32xf32>
    %cst_34 = arith.constant dense<0.000000e+00> : vector<32x128xf32>
    %46 = tpu.matmul %45, %42, %cst_34 {dimension_numbers = #tpu.dot_dimension_numbers<[1], [0], [0], [1], [0, 0, 1, 1], [], []>} : vector<32x32xf32>, vector<32x128xf32>, vector<32x128xf32> -> vector<32x128xf32>
    %47 = arith.addf %44, %46 : vector<32x128xf32>
    %c384_35 = arith.constant 384 : index
    %c0_36 = arith.constant 0 : index
    %48 = vector.load %arg3[%c384_35, %c0_36] : memref<576x1xf32, #tpu.memory_space<vmem>>, vector<32x1xf32>
    %49 = vector.broadcast %48 : vector<32x1xf32> to vector<32x128xf32>
    %50 = arith.addf %47, %49 : vector<32x128xf32>
    %cst_37 = arith.constant 0.000000e+00 : f32
    %51 = vector.broadcast %cst_37 : f32 to vector<32x128xf32>
    %52 = arith.maximumf %50, %51 : vector<32x128xf32>
    %c448 = arith.constant 448 : index
    %c0_38 = arith.constant 0 : index
    %53 = vector.load %arg2[%c448, %c0_38] : memref<768x128xf32, #tpu.memory_space<vmem>>, vector<40x80xf32>
    %cst_39 = arith.constant dense<0.000000e+00> : vector<40x128xf32>
    %54 = tpu.matmul %53, %21, %cst_39 {dimension_numbers = #tpu.dot_dimension_numbers<[1], [0], [0], [1], [0, 0, 1, 1], [], []>} : vector<40x80xf32>, vector<80x128xf32>, vector<40x128xf32> -> vector<40x128xf32>
    %c488 = arith.constant 488 : index
    %c0_40 = arith.constant 0 : index
    %55 = vector.load %arg2[%c488, %c0_40] : memref<768x128xf32, #tpu.memory_space<vmem>>, vector<40x32xf32>
    %cst_41 = arith.constant dense<0.000000e+00> : vector<40x128xf32>
    %56 = tpu.matmul %55, %52, %cst_41 {dimension_numbers = #tpu.dot_dimension_numbers<[1], [0], [0], [1], [0, 0, 1, 1], [], []>} : vector<40x32xf32>, vector<32x128xf32>, vector<40x128xf32> -> vector<40x128xf32>
    %57 = arith.addf %54, %56 : vector<40x128xf32>
    %c416_42 = arith.constant 416 : index
    %c0_43 = arith.constant 0 : index
    %58 = vector.load %arg3[%c416_42, %c0_43] : memref<576x1xf32, #tpu.memory_space<vmem>>, vector<40x1xf32>
    %59 = vector.broadcast %58 : vector<40x1xf32> to vector<40x128xf32>
    %60 = arith.addf %57, %59 : vector<40x128xf32>
    %cst_44 = arith.constant 0.000000e+00 : f32
    %61 = vector.broadcast %cst_44 : f32 to vector<40x128xf32>
    %62 = arith.maximumf %60, %61 : vector<40x128xf32>
    %c528 = arith.constant 528 : index
    %c0_45 = arith.constant 0 : index
    %63 = vector.load %arg2[%c528, %c0_45] : memref<768x128xf32, #tpu.memory_space<vmem>>, vector<48x88xf32>
    %cst_46 = arith.constant dense<0.000000e+00> : vector<48x128xf32>
    %64 = tpu.matmul %63, %14, %cst_46 {dimension_numbers = #tpu.dot_dimension_numbers<[1], [0], [0], [1], [0, 0, 1, 1], [], []>} : vector<48x88xf32>, vector<88x128xf32>, vector<48x128xf32> -> vector<48x128xf32>
    %c576 = arith.constant 576 : index
    %c0_47 = arith.constant 0 : index
    %65 = vector.load %arg2[%c576, %c0_47] : memref<768x128xf32, #tpu.memory_space<vmem>>, vector<48x40xf32>
    %cst_48 = arith.constant dense<0.000000e+00> : vector<48x128xf32>
    %66 = tpu.matmul %65, %62, %cst_48 {dimension_numbers = #tpu.dot_dimension_numbers<[1], [0], [0], [1], [0, 0, 1, 1], [], []>} : vector<48x40xf32>, vector<40x128xf32>, vector<48x128xf32> -> vector<48x128xf32>
    %67 = arith.addf %64, %66 : vector<48x128xf32>
    %c456 = arith.constant 456 : index
    %c0_49 = arith.constant 0 : index
    %68 = vector.load %arg3[%c456, %c0_49] : memref<576x1xf32, #tpu.memory_space<vmem>>, vector<48x1xf32>
    %69 = vector.broadcast %68 : vector<48x1xf32> to vector<48x128xf32>
    %70 = arith.addf %67, %69 : vector<48x128xf32>
    %cst_50 = arith.constant 0.000000e+00 : f32
    %71 = vector.broadcast %cst_50 : f32 to vector<48x128xf32>
    %72 = arith.maximumf %70, %71 : vector<48x128xf32>
    %c624 = arith.constant 624 : index
    %c0_51 = arith.constant 0 : index
    %73 = vector.load %arg2[%c624, %c0_51] : memref<768x128xf32, #tpu.memory_space<vmem>>, vector<72x96xf32>
    %cst_52 = arith.constant dense<0.000000e+00> : vector<72x128xf32>
    %74 = tpu.matmul %73, %7, %cst_52 {dimension_numbers = #tpu.dot_dimension_numbers<[1], [0], [0], [1], [0, 0, 1, 1], [], []>} : vector<72x96xf32>, vector<96x128xf32>, vector<72x128xf32> -> vector<72x128xf32>
    %c696 = arith.constant 696 : index
    %c0_53 = arith.constant 0 : index
    %75 = vector.load %arg2[%c696, %c0_53] : memref<768x128xf32, #tpu.memory_space<vmem>>, vector<72x48xf32>
    %cst_54 = arith.constant dense<0.000000e+00> : vector<72x128xf32>
    %76 = tpu.matmul %75, %72, %cst_54 {dimension_numbers = #tpu.dot_dimension_numbers<[1], [0], [0], [1], [0, 0, 1, 1], [], []>} : vector<72x48xf32>, vector<48x128xf32>, vector<72x128xf32> -> vector<72x128xf32>
    %77 = arith.addf %74, %76 : vector<72x128xf32>
    %c504 = arith.constant 504 : index
    %c0_55 = arith.constant 0 : index
    %78 = vector.load %arg3[%c504, %c0_55] : memref<576x1xf32, #tpu.memory_space<vmem>>, vector<72x1xf32>
    %79 = vector.broadcast %78 : vector<72x1xf32> to vector<72x128xf32>
    %80 = arith.addf %77, %79 : vector<72x128xf32>
    %c0_56 = arith.constant 0 : index
    %c0_57 = arith.constant 0 : index
    %81 = vector.load %arg4[%c0_56, %c0_57] : memref<72x128xf32, #tpu.memory_space<vmem>>, vector<72x128xf32>
    tpu.vector_store %arg4[%c0_56, %c0_57], %80 {strides = array<i32>} : memref<72x128xf32, #tpu.memory_space<vmem>>, vector<72x128xf32>,
    return
  }
  func.func @transform_0(%arg0: i32) -> (i32, i32) {
    %c0_i32 = arith.constant 0 : i32
    %c0_i32_0 = arith.constant 0 : i32
    return %c0_i32, %arg0 : i32, i32
  }
  func.func @transform_1(%arg0: i32) -> (i32, i32) {
    %c0_i32 = arith.constant 0 : i32
    %c0_i32_0 = arith.constant 0 : i32
    %c0_i32_1 = arith.constant 0 : i32
    return %c0_i32, %c0_i32_0 : i32, i32
  }
  func.func @transform_2(%arg0: i32) -> (i32, i32) {
    %c0_i32 = arith.constant 0 : i32
    %c0_i32_0 = arith.constant 0 : i32
    %c0_i32_1 = arith.constant 0 : i32
    return %c0_i32, %c0_i32_0 : i32, i32
  }
  func.func @transform_3(%arg0: i32) -> (i32, i32) {
    %c0_i32 = arith.constant 0 : i32
    %c0_i32_0 = arith.constant 0 : i32
    return %c0_i32, %arg0 : i32, i32
  }
}

</mosaic_0001>

<llo_original>
// kernel: tpu_custom_call.1
$region0: #{tpu_custom_call.1}
  #allocation0 [shape = 'u32[]', space=smem, size = 0x4, offset = 0x4, fixed_abs, tag = 'smem constant byte address 0x4 - core index']
  #allocation1 [shape = 'u32[144,128]{1,0:T(1,128)}', space=vmem, size = 0x12000, scoped, tag = 'internal scratch']
  %s0 = inlined_call_operand.vmem [shape: f32[72,256], index: 0, kind: input, shape index: {}]
  %s1 = inlined_call_operand.hbm [shape: f32[768,128], index: 1, kind: input, shape index: {}]
  %s2 = inlined_call_operand.vmem [shape: f32[576,1], index: 2, kind: input, shape index: {}]
  %s3 = inlined_call_operand.hbm [shape: f32[72,256], index: 3, kind: output, shape index: {}]
  %s4 = sld [smem:[#allocation0]]
  $region87: #{tpu_custom_call.1} parent=0
    _
  %s6 = ssub.s32 1, %s4
  %s7 = scalar_select 0, %s6, %s4
  $region1: #{tpu_custom_call.1} parent=0
    #allocation2 [shape = 'u8[73728]{0}', space=vmem, size = 0x12000, scoped, tag = 'input window, operand 0']
    #allocation3 [shape = 'u8[393216]{0}', space=vmem, size = 0x60000, scoped, tag = 'input window, operand 1, single buffered']
    #allocation4 [shape = 's32[2]{0}', space=sflag, size = 0x8, scoped, tag = 'scoped memory for tpu_custom_call.1']
    #allocation5 [shape = 's32[2]{0}', space=sflag, size = 0x8, scoped, tag = 'scoped memory for tpu_custom_call.1']
    #allocation6 [shape = 'u8[73728]{0}', space=vmem, size = 0x12000, scoped, tag = 'output window, operand 0']
    %8 = vsyncpa [#allocation4], 0
    %9 = vsyncpa [#allocation5], 0
    %s10 = scalar_lea.sflag [#allocation5], 1
    %11 = vsyncpa %s10, 0
    loop: start=0, step=1, limit=4
    $region2: #{tpu_custom_call.1} parent=1 // loop_pre_header
      _
    $region3: #{tpu_custom_call.1} parent=1 // loop_header
      %s13 = sphi 0, %s17
      %p14 = scmp.ge.s32.totalorder %s13, 4
      %s23 = sphi 0, %s25
      %s26 = sphi 0, %s23
      %s27 = sphi 0, %s26
      %s43 = sphi 0, %s27
      %s47 = sphi 0, %s47
      %s49 = sphi 0, %s47
      %s50 = sphi 0, %s49
      %s64 = sphi 0, %s50
      %s68 = sphi 0, %s68
      %s70 = sphi 0, %s68
      %s71 = sphi 0, %s70
      %s85 = sphi 0, %s71
      %s91 = sphi 0, %s93
      %s94 = sphi 0, %s91
      %s95 = sphi 0, %s94
      %s111 = sphi 0, %s95
    $region4: #{tpu_custom_call.1} parent=1 // loop_header_branch
      %16 = sbr.rel (%p14) target = $region8
    $region5: #{tpu_custom_call.1} parent=1 // loop_body
      %s18 = ssub.s32 %s13, 1
      %s19 = ssub.s32 %s13, 2
      %s20 = sadd.s32 %s13, 1
      %s21 = ssub.s32 %s13, %s20
      %p22 = scmp.eq.s32.totalorder %s21, 0
      %s24 = sadd.s32 %s23, 1
      %s25 = scalar_select %p22, %s23, %s24
      %p28 = pneg %p22
      %p29 = scmp.eq.s32.totalorder %s13, 1
      %p30 = por %p28, %p29
      %p31 = scmp.ne.s32.totalorder %s23, %s26
      %p32 = scmp.eq.s32.totalorder %s13, 0
      %p33 = por %p31, %p32
      %p34 = scmp.ne.s32.totalorder %s23, %s26
      %p35 = scmp.eq.s32.totalorder %s18, 1
      %p36 = por %p34, %p35
      %p37 = scmp.ne.s32.totalorder %s26, %s27
      %p38 = scmp.eq.s32.totalorder %s18, 0
      %p39 = por %p37, %p38
      %p40 = scmp.ne.s32.totalorder %s26, %s27
      %p41 = scmp.eq.s32.totalorder %s19, 1
      %p42 = por %p40, %p41
      %p44 = scmp.ne.s32.totalorder %s27, %s43
      %p45 = scmp.eq.s32.totalorder %s19, 0
      %p46 = por %p44, %p45
      %s48 = sadd.s32 %s47, 1
      %p51 = scmp.eq.s32.totalorder %s13, 1
      %p52 = scmp.ne.s32.totalorder %s47, %s49
      %p53 = scmp.eq.s32.totalorder %s13, 0
      %p54 = por %p52, %p53
      %p55 = scmp.ne.s32.totalorder %s47, %s49
      %p56 = scmp.eq.s32.totalorder %s18, 1
      %p57 = por %p55, %p56
      %p58 = scmp.ne.s32.totalorder %s49, %s50
      %p59 = scmp.eq.s32.totalorder %s18, 0
      %p60 = por %p58, %p59
      %p61 = scmp.ne.s32.totalorder %s49, %s50
      %p62 = scmp.eq.s32.totalorder %s19, 1
      %p63 = por %p61, %p62
      %p65 = scmp.ne.s32.totalorder %s50, %s64
      %p66 = scmp.eq.s32.totalorder %s19, 0
      %p67 = por %p65, %p66
      %s69 = sadd.s32 %s68, 1
      %p72 = scmp.eq.s32.totalorder %s13, 1
      %p73 = scmp.ne.s32.totalorder %s68, %s70
      %p74 = scmp.eq.s32.totalorder %s13, 0
      %p75 = por %p73, %p74
      %p76 = scmp.ne.s32.totalorder %s68, %s70
      %p77 = scmp.eq.s32.totalorder %s18, 1
      %p78 = por %p76, %p77
      %p79 = scmp.ne.s32.totalorder %s70, %s71
      %p80 = scmp.eq.s32.totalorder %s18, 0
      %p81 = por %p79, %p80
      %p82 = scmp.ne.s32.totalorder %s70, %s71
      %p83 = scmp.eq.s32.totalorder %s19, 1
      %p84 = por %p82, %p83
      %p86 = scmp.ne.s32.totalorder %s71, %s85
      %p87 = scmp.eq.s32.totalorder %s19, 0
      %p88 = por %p86, %p87
      %s89 = ssub.s32 %s13, %s20
      %p90 = scmp.eq.s32.totalorder %s89, 0
      %s92 = sadd.s32 %s91, 1
      %s93 = scalar_select %p90, %s91, %s92
      %p96 = pneg %p90
      %p97 = scmp.eq.s32.totalorder %s13, 1
      %p98 = por %p96, %p97
      %p99 = scmp.ne.s32.totalorder %s91, %s94
      %p100 = scmp.eq.s32.totalorder %s13, 0
      %p101 = por %p99, %p100
      %p102 = scmp.ne.s32.totalorder %s91, %s94
      %p103 = scmp.eq.s32.totalorder %s18, 1
      %p104 = por %p102, %p103
      %p105 = scmp.ne.s32.totalorder %s94, %s95
      %p106 = scmp.eq.s32.totalorder %s18, 0
      %p107 = por %p105, %p106
      %p108 = scmp.ne.s32.totalorder %s94, %s95
      %p109 = scmp.eq.s32.totalorder %s19, 1
      %p110 = por %p108, %p109
      %p112 = scmp.ne.s32.totalorder %s95, %s111
      %p113 = scmp.eq.s32.totalorder %s19, 0
      %p114 = por %p112, %p113
      %p115 = scmp.le.s32.totalorder 1, %s13
      %p116 = scmp.lt.s32.totalorder %s13, 3
      %p117 = pnand %p115, %p116
      %p118 = pneg %p117
      // Predicated region
      $region9: #{tpu_custom_call.1} parent=5 // pred_check
        _
      $region10: #{tpu_custom_call.1} parent=5 // pred_check_branch
        %120 = sbr.rel (%p117) target = $region12
      $region11: #{tpu_custom_call.1} parent=5 // pred_region
        %s121 = ssub.s32 %s13, 1
        // Predicated region
        $region13: #{tpu_custom_call.1} parent=11 // pred_check
          %p122 = pneg %p60
        $region14: #{tpu_custom_call.1} parent=11 // pred_check_branch
          %124 = sbr.rel (%p122) target = $region16
        $region15: #{tpu_custom_call.1} parent=11 // pred_region
          %s126 = ssub.s32 12288, 12288
          %127 = vsyncadd [#allocation4], %s126
          %s128 = sshll.u32 [#allocation3], 4
          %s129 = int_to_ptr.vmem [resolvable:$true] %s128
          %134 = dma.hbm_to_vmem [thread:$0]  %s1, 12288, %s129, [#allocation4], 128, 128, 8
        $region16: #{tpu_custom_call.1} parent=11 // pred_fallthru
          _
        // Predicated region
        $region17: #{tpu_custom_call.1} parent=11 // pred_check
          %p135 = pneg %p81
        $region18: #{tpu_custom_call.1} parent=11 // pred_check_branch
          %137 = sbr.rel (%p135) target = $region20
        $region19: #{tpu_custom_call.1} parent=11 // pred_region
          _
        $region20: #{tpu_custom_call.1} parent=11 // pred_fallthru
          _
      $region12: #{tpu_custom_call.1} parent=5 // pred_fallthru
        _
      %p138 = scmp.lt.s32.totalorder %s13, 2
      // Predicated region
      $region21: #{tpu_custom_call.1} parent=5 // pred_check
        %p139 = pneg %p138
      $region22: #{tpu_custom_call.1} parent=5 // pred_check_branch
        %141 = sbr.rel (%p139) target = $region24
      $region23: #{tpu_custom_call.1} parent=5 // pred_region
        // Predicated region
        $region25: #{tpu_custom_call.1} parent=23 // pred_check
          %p142 = pneg %p33
        $region26: #{tpu_custom_call.1} parent=23 // pred_check_branch
          %144 = sbr.rel (%p142) target = $region28
        $region27: #{tpu_custom_call.1} parent=23 // pred_region
          %s145 = sand.u32 %s23, 1
          %s146 = sand.u32 %s23, 1
          %s147 = smul.addr %s146, 72
          %s148 = scalar_lea.vmem [#allocation2], %s147
          %s149 = smul.addr %s13, 8
          %s150 = scalar_lea.vmem %s0, %s149
          // Predicated region
          $region29: #{tpu_custom_call.1} parent=27 // pred_check
            _
          $region30: #{tpu_custom_call.1} parent=27 // pred_check_branch
            %152 = sbr.rel (0) target = $region32
          $region31: #{tpu_custom_call.1} parent=27 // pred_region
            // Predicated region
            $region33: #{tpu_custom_call.1} parent=31 // pred_check
              _
            $region34: #{tpu_custom_call.1} parent=31 // pred_check_branch
              %154 = sbr.rel (0) target = $region36
            $region35: #{tpu_custom_call.1} parent=31 // pred_region
              // Predicated region
              $region48: #{tpu_custom_call.1} parent=35 // pred_check
                _
              $region49: #{tpu_custom_call.1} parent=35 // pred_check_branch
                %185 = sbr.rel (0) target = $region51
              $region50: #{tpu_custom_call.1} parent=35 // pred_region
                loop: start=0, step=1, limit=1
                $region52: #{tpu_custom_call.1} parent=50 // loop_pre_header
                  _
                $region53: #{tpu_custom_call.1} parent=50 // loop_header
                  %s187 = sphi 0, %s191
                  %p188 = scmp.ge.s32.totalorder %s187, 1
                  %s192 = sphi %s150, %s150
                  %s193 = sphi %s148, %s148
                $region54: #{tpu_custom_call.1} parent=50 // loop_header_branch
                  %190 = sbr.rel (%p188) target = $region58
                $region55: #{tpu_custom_call.1} parent=50 // loop_body
                  %v194 = vld [vmem:[%s192] sm:$0xff]
                  %195 = vst [vmem:[%s193] sm:$0xff] %v194
                  %v196 = vld [vmem:[%s192 + $0x10] sm:$0xff]
                  %197 = vst [vmem:[%s193 + $0x8] sm:$0xff] %v196
                  %v198 = vld [vmem:[%s192 + $0x20] sm:$0xff]
                  %199 = vst [vmem:[%s193 + $0x10] sm:$0xff] %v198
                  %v200 = vld [vmem:[%s192 + $0x30] sm:$0xff]
                  %201 = vst [vmem:[%s193 + $0x18] sm:$0xff] %v200
                  %v202 = vld [vmem:[%s192 + $0x40] sm:$0xff]
                  %203 = vst [vmem:[%s193 + $0x20] sm:$0xff] %v202
                  %v204 = vld [vmem:[%s192 + $0x50] sm:$0xff]
                  %205 = vst [vmem:[%s193 + $0x28] sm:$0xff] %v204
                  %v206 = vld [vmem:[%s192 + $0x60] sm:$0xff]
                  %207 = vst [vmem:[%s193 + $0x30] sm:$0xff] %v206
                  %v208 = vld [vmem:[%s192 + $0x70] sm:$0xff]
                  %209 = vst [vmem:[%s193 + $0x38] sm:$0xff] %v208
                  %v210 = vld [vmem:[%s192 + $0x80] sm:$0xff]
                  %211 = vst [vmem:[%s193 + $0x40] sm:$0xff] %v210
                $region56: #{tpu_custom_call.1} parent=50 // loop_footer
                  %s191 = sadd.s32 1, %s187
                $region57: #{tpu_custom_call.1} parent=50 // loop_footer_branch
                  %186 = sbr.rel target = $region53
                $region58: #{tpu_custom_call.1} parent=50 // loop_exit
                  _
              $region51: #{tpu_custom_call.1} parent=35 // pred_fallthru
                _
              // Predicated region
              $region59: #{tpu_custom_call.1} parent=35 // pred_check
                _
              $region60: #{tpu_custom_call.1} parent=35 // pred_check_branch
                %213 = sbr.rel target = $region62
              $region61: #{tpu_custom_call.1} parent=35 // pred_region
                _
              $region62: #{tpu_custom_call.1} parent=35 // pred_fallthru
                _
            $region36: #{tpu_custom_call.1} parent=31 // pred_fallthru
              _
            // Predicated region
            $region37: #{tpu_custom_call.1} parent=31 // pred_check
              _
            $region38: #{tpu_custom_call.1} parent=31 // pred_check_branch
              %156 = sbr.rel target = $region40
            $region39: #{tpu_custom_call.1} parent=31 // pred_region
              loop: start=0, step=1, limit=1
              $region41: #{tpu_custom_call.1} parent=39 // loop_pre_header
                _
              $region42: #{tpu_custom_call.1} parent=39 // loop_header
                %s159 = sphi 0, %s163
                %p160 = scmp.ge.s32.totalorder %s159, 1
                %s164 = sphi %s150, %s150
                %s165 = sphi %s148, %s148
              $region43: #{tpu_custom_call.1} parent=39 // loop_header_branch
                %162 = sbr.rel (%p160) target = $region47
              $region44: #{tpu_custom_call.1} parent=39 // loop_body
                %v166 = vld [vmem:[%s164] sm:$0xff]
                %167 = vst [vmem:[%s165] sm:$0xff] %v166
                %v168 = vld [vmem:[%s164 + $0x10] sm:$0xff]
                %169 = vst [vmem:[%s165 + $0x8] sm:$0xff] %v168
                %v170 = vld [vmem:[%s164 + $0x20] sm:$0xff]
                %171 = vst [vmem:[%s165 + $0x10] sm:$0xff] %v170
                %v172 = vld [vmem:[%s164 + $0x30] sm:$0xff]
                %173 = vst [vmem:[%s165 + $0x18] sm:$0xff] %v172
                %v174 = vld [vmem:[%s164 + $0x40] sm:$0xff]
                %175 = vst [vmem:[%s165 + $0x20] sm:$0xff] %v174
                %v176 = vld [vmem:[%s164 + $0x50] sm:$0xff]
                %177 = vst [vmem:[%s165 + $0x28] sm:$0xff] %v176
                %v178 = vld [vmem:[%s164 + $0x60] sm:$0xff]
                %179 = vst [vmem:[%s165 + $0x30] sm:$0xff] %v178
                %v180 = vld [vmem:[%s164 + $0x70] sm:$0xff]
                %181 = vst [vmem:[%s165 + $0x38] sm:$0xff] %v180
                %v182 = vld [vmem:[%s164 + $0x80] sm:$0xff]
                %183 = vst [vmem:[%s165 + $0x40] sm:$0xff] %v182
              $region45: #{tpu_custom_call.1} parent=39 // loop_footer
                %s163 = sadd.s32 1, %s159
              $region46: #{tpu_custom_call.1} parent=39 // loop_footer_branch
                %158 = sbr.rel target = $region42
              $region47: #{tpu_custom_call.1} parent=39 // loop_exit
                _
            $region40: #{tpu_custom_call.1} parent=31 // pred_fallthru
              _
          $region32: #{tpu_custom_call.1} parent=27 // pred_fallthru
            _
          %214 = vnop
        $region28: #{tpu_custom_call.1} parent=23 // pred_fallthru
          _
      $region24: #{tpu_custom_call.1} parent=5 // pred_fallthru
        _
      %p215 = scmp.le.s32.totalorder 1, %s13
      %p216 = scmp.lt.s32.totalorder %s13, 3
      %p217 = pnand %p215, %p216
      %p218 = pneg %p217
      // Predicated region
      $region63: #{tpu_custom_call.1} parent=5 // pred_check
        _
      $region64: #{tpu_custom_call.1} parent=5 // pred_check_branch
        %220 = sbr.rel (%p217) target = $region66
      $region65: #{tpu_custom_call.1} parent=5 // pred_region
        %s221 = ssub.s32 %s13, 1
        %s222 = sand.u32 %s26, 1
        %s223 = sand.u32 %s26, 1
        %s224 = smul.addr %s223, 72
        %s225 = scalar_lea.vmem [#allocation2], %s224
        // Predicated region
        $region67: #{tpu_custom_call.1} parent=65 // pred_check
          %p226 = pneg %p39
        $region68: #{tpu_custom_call.1} parent=65 // pred_check_branch
          %228 = sbr.rel (%p226) target = $region70
        $region69: #{tpu_custom_call.1} parent=65 // pred_region
          _
        $region70: #{tpu_custom_call.1} parent=65 // pred_fallthru
          _
        // Predicated region
        $region71: #{tpu_custom_call.1} parent=65 // pred_check
          %p229 = pneg %p60
        $region72: #{tpu_custom_call.1} parent=65 // pred_check_branch
          %231 = sbr.rel (%p229) target = $region74
        $region73: #{tpu_custom_call.1} parent=65 // pred_region
          %232 = dma.done [#allocation4], 12288
        $region74: #{tpu_custom_call.1} parent=65 // pred_fallthru
          _
        %s233 = sand.u32 %s26, 1
        %s234 = sand.u32 %s26, 1
        %s235 = smul.addr %s234, 72
        %s236 = scalar_lea.vmem [#allocation2], %s235
        %p237 = pneg %p39
        %p238 = pneg %p36
        %p239 = pneg %p60
        %p240 = pneg %p57
        %p241 = pneg %p81
        %p242 = pneg %p78
        %p243 = pneg %p107
        %p244 = pneg %p104
        %s245 = sand.u32 %s94, 1
        %s246 = scalar_lea.sflag [#allocation5], %s245
        %s247 = sand.u32 %s94, 1
        %s248 = smul.addr %s247, 72
        %s249 = scalar_lea.vmem [#allocation6], %s248
        %v250 = vld [vmem:[%s225] sm:$0xff]
        %v251 = vld [vmem:[%s225 + $0x8] sm:$0xff]
        %v252 = vld [vmem:[%s225 + $0x10] sm:$0xff]
        %v253 = vld [vmem:[%s225 + $0x18] sm:$0xff]
        %v254 = vld [vmem:[%s225 + $0x20] sm:$0xff]
        %v255 = vld [vmem:[%s225 + $0x28] sm:$0xff]
        %v256 = vld [vmem:[%s225 + $0x30] sm:$0xff]
        %v257 = vld [vmem:[%s225 + $0x38] sm:$0xff]
        %v258 = vld [vmem:[%s225 + $0x40] sm:$0xff]
        %v259 = vld [vmem:[#allocation3] sm:$0xff]
        %v260 = vld [vmem:[#allocation3 + $0x8] sm:$0xff]
        %v261 = vld [vmem:[#allocation3 + $0x10] sm:$0xff]
        %v262 = vld [vmem:[#allocation3 + $0x18] sm:$0xff]
        %v263 = vld [vmem:[#allocation3 + $0x20] sm:$0xff]
        %v264 = vld [vmem:[#allocation3 + $0x28] sm:$0xff]
        %v265 = vld [vmem:[#allocation3 + $0x30] sm:$0xff]
        %v266 = vld [vmem:[#allocation3 + $0x38] sm:$0xff]
        %v267 = vld [vmem:[#allocation3 + $0x40] sm:$0xff]
        %v268 = vld [vmem:[#allocation3 + $0x48] sm:$0xff]
        %v269 = vld [vmem:[#allocation3 + $0x50] sm:$0xff]
        %v270 = vld [vmem:[#allocation3 + $0x58] sm:$0xff]
        %v271 = vld [vmem:[%s2] sm:$0xff]
        %v272 = vld [vmem:[%s2 + $0x8] sm:$0xff]
        %v273 = vld [vmem:[%s2 + $0x10] sm:$0xff]
        %v274 = vld [vmem:[%s2 + $0x18] sm:$0xff]
        %v275 = vld [vmem:[%s2 + $0x20] sm:$0xff]
        %v276 = vld [vmem:[%s2 + $0x28] sm:$0xff]
        %v277 = vld [vmem:[%s2 + $0x30] sm:$0xff]
        %v278 = vld [vmem:[%s2 + $0x38] sm:$0xff]
        %v279 = vld [vmem:[%s2 + $0x40] sm:$0xff]
        %v280 = vld [vmem:[%s2 + $0x48] sm:$0xff]
        %v281 = vld [vmem:[%s2 + $0x50] sm:$0xff]
        %v282 = vld [vmem:[%s2 + $0x58] sm:$0xff]
        %284 = vset.pattern.permute.xlu0 0
        %285 = vperm.xlu0 %284, %v271
        %v286 = vpop.permute.xlu0 %285
        %289 = vset.pattern.permute.xlu0 0
        %290 = vperm.xlu0 %289, %v272
        %v291 = vpop.permute.xlu0 %290
        %294 = vset.pattern.permute.xlu0 0
        %295 = vperm.xlu0 %294, %v273
        %v296 = vpop.permute.xlu0 %295
        %299 = vset.pattern.permute.xlu0 0
        %300 = vperm.xlu0 %299, %v274
        %v301 = vpop.permute.xlu0 %300
        %304 = vset.pattern.permute.xlu0 0
        %305 = vperm.xlu0 %304, %v275
        %v306 = vpop.permute.xlu0 %305
        %309 = vset.pattern.permute.xlu0 0
        %310 = vperm.xlu0 %309, %v276
        %v311 = vpop.permute.xlu0 %310
        %314 = vset.pattern.permute.xlu0 0
        %315 = vperm.xlu0 %314, %v277
        %v316 = vpop.permute.xlu0 %315
        %319 = vset.pattern.permute.xlu0 0
        %320 = vperm.xlu0 %319, %v278
        %v321 = vpop.permute.xlu0 %320
        %324 = vset.pattern.permute.xlu0 0
        %325 = vperm.xlu0 %324, %v279
        %v326 = vpop.permute.xlu0 %325
        %329 = vset.pattern.permute.xlu0 0
        %330 = vperm.xlu0 %329, %v280
        %v331 = vpop.permute.xlu0 %330
        %334 = vset.pattern.permute.xlu0 0
        %335 = vperm.xlu0 %334, %v281
        %v336 = vpop.permute.xlu0 %335
        %339 = vset.pattern.permute.xlu0 0
        %340 = vperm.xlu0 %339, %v282
        %v341 = vpop.permute.xlu0 %340
        %vm343 = vcmask 588800
        %v345 = vsel %vm343, %v259, 0
        %v348 = vsel %vm343, %v260, 0
        %v351 = vsel %vm343, %v261, 0
        %v354 = vsel %vm343, %v262, 0
        %v357 = vsel %vm343, %v263, 0
        %v360 = vsel %vm343, %v264, 0
        %v363 = vsel %vm343, %v265, 0
        %v366 = vsel %vm343, %v266, 0
        %v369 = vsel %vm343, %v267, 0
        %v372 = vsel %vm343, %v268, 0
        %v375 = vsel %vm343, %v269, 0
        %v378 = vsel %vm343, %v270, 0
        %380 = vmatprep.subr.mxu0 0.0
        %381 = vmatpush1.msra.mxu0 %v250
        %382 = vmatprep.subr.mxu0 0.0
        %383 = vmatpush1.msra.mxu0 %v251
        %384 = vmatprep.subr.mxu0 0.0
        %385 = vmatpush1.msra.mxu0 %v252
        %386 = vmatprep.subr.mxu0 0.0
        %387 = vmatpush1.msra.mxu0 %v253
        %388 = vmatprep.subr.mxu0 0.0
        %389 = vmatpush1.msra.mxu0 %v254
        %390 = vmatprep.subr.mxu0 0.0
        %391 = vmatpush1.msra.mxu0 %v255
        %392 = vmatprep.subr.mxu0 0.0
        %393 = vmatpush1.msra.mxu0 %v256
        %394 = vmatprep.subr.mxu0 0.0
        %395 = vmatpush1.msra.mxu0 %v257
        %396 = vmatprep.subr.mxu0 0.0
        %397 = vmatpush1.msra.mxu0 %v258
        %398 = vmatprep.subr.mxu0 0.0
        %399 = vmatpush1.msra.mxu0 0.0
        %400 = vmatprep.subr.mxu0 0.0
        %401 = vmatpush1.msra.mxu0 0.0
        %402 = vmatprep.subr.mxu0 0.0
        %403 = vmatpush1.msra.mxu0 0.0
        %404 = vmatprep.subr.mxu0 0.0
        %405 = vmatpush1.msra.mxu0 0.0
        %406 = vmatprep.subr.mxu0 0.0
        %407 = vmatpush1.msra.mxu0 0.0
        %408 = vmatprep.subr.mxu0 0.0
        %409 = vmatpush1.msra.mxu0 0.0
        %410 = vmatprep.subr.mxu0 0.0
        %411 = vmatpush1.msra.mxu0 0.0
        %412 = vmatprep.subr.mxu0 0.0
        %413 = vmatpush1.msra.mxu0 0.0
        %414 = vmatprep.subr.mxu0 0.0
        %415 = vmatpush1.msra.mxu0 0.0
        %416 = vmatprep.subr.mxu0 0.0
        %417 = vmatpush1.msra.mxu0 0.0
        %418 = vmatprep.subr.mxu0 0.0
        %419 = vmatpush1.msra.mxu0 0.0
        %420 = vmatprep.subr.mxu0 0.0
        %421 = vmatpush1.msra.mxu0 0.0
        %422 = vmatprep.subr.mxu0 0.0
        %423 = vmatpush1.msra.mxu0 0.0
        %424 = vmatprep.subr.mxu0 0.0
        %425 = vmatpush1.msra.mxu0 0.0
        %426 = vmatprep.subr.mxu0 0.0
        %427 = vmatpush1.msra.mxu0 0.0
        %428 = vmatprep.subr.mxu0 0.0
        %429 = vmatpush1.msra.mxu0 0.0
        %430 = vmatprep.subr.mxu0 0.0
        %431 = vmatpush1.msra.mxu0 0.0
        %432 = vmatprep.subr.mxu0 0.0
        %433 = vmatpush1.msra.mxu0 0.0
        %434 = vmatprep.subr.mxu0 0.0
        %435 = vmatpush1.msra.mxu0 0.0
        %436 = vmatprep.subr.mxu0 0.0
        %437 = vmatpush1.msra.mxu0 0.0
        %438 = vmatprep.subr.mxu0 0.0
        %439 = vmatpush1.msra.mxu0 0.0
        %440 = vmatprep.subr.mxu0 0.0
        %441 = vmatpush1.msra.mxu0 0.0
        %442 = vmatprep.subr.mxu0 0.0
        %443 = vmatpush1.msra.mxu0 0.0
        %444 = vmatprep.mubr.f32.mxu0 0.0
        %445 = vmatmul.mubr.f32.gmra.mrb[0].mxu0 %v345
        %v446 = vpop.f32.mrb[0].mxu0
        %v447 = vadd.f32 %v286, %v446
        %v448 = vpop.f32.mrb[0].mxu0
        %449 = vmatprep.mubr.f32.mxu0 0.0
        %450 = vmatmul.mubr.f32.gmra.mrb[0].mxu0 %v348
        %v451 = vpop.f32.mrb[0].mxu0
        %v452 = vadd.f32 %v291, %v451
        %v453 = vpop.f32.mrb[0].mxu0
        %454 = vmatprep.mubr.f32.mxu0 0.0
        %455 = vmatmul.mubr.f32.gmra.mrb[0].mxu0 %v351
        %v456 = vpop.f32.mrb[0].mxu0
        %v457 = vadd.f32 %v296, %v456
        %v458 = vpop.f32.mrb[0].mxu0
        %459 = vmatprep.mubr.f32.mxu0 0.0
        %460 = vmatmul.mubr.f32.gmra.mrb[0].mxu0 %v354
        %v461 = vpop.f32.mrb[0].mxu0
        %v462 = vadd.f32 %v301, %v461
        %v463 = vpop.f32.mrb[0].mxu0
        %464 = vmatprep.mubr.f32.mxu0 0.0
        %465 = vmatmul.mubr.f32.gmra.mrb[0].mxu0 %v357
        %v466 = vpop.f32.mrb[0].mxu0
        %v467 = vadd.f32 %v306, %v466
        %v468 = vpop.f32.mrb[0].mxu0
        %469 = vmatprep.mubr.f32.mxu0 0.0
        %470 = vmatmul.mubr.f32.gmra.mrb[0].mxu0 %v360
        %v471 = vpop.f32.mrb[0].mxu0
        %v472 = vadd.f32 %v311, %v471
        %v473 = vpop.f32.mrb[0].mxu0
        %474 = vmatprep.mubr.f32.mxu0 0.0
        %475 = vmatmul.mubr.f32.gmra.mrb[0].mxu0 %v363
        %v476 = vpop.f32.mrb[0].mxu0
        %v477 = vadd.f32 %v316, %v476
        %v478 = vpop.f32.mrb[0].mxu0
        %479 = vmatprep.mubr.f32.mxu0 0.0
        %480 = vmatmul.mubr.f32.gmra.mrb[0].mxu0 %v366
        %v481 = vpop.f32.mrb[0].mxu0
        %v482 = vadd.f32 %v321, %v481
        %v483 = vpop.f32.mrb[0].mxu0
        %484 = vmatprep.mubr.f32.mxu0 0.0
        %485 = vmatmul.mubr.f32.gmra.mrb[0].mxu0 %v369
        %v486 = vpop.f32.mrb[0].mxu0
        %v487 = vadd.f32 %v326, %v486
        %v488 = vpop.f32.mrb[0].mxu0
        %489 = vmatprep.mubr.f32.mxu0 0.0
        %490 = vmatmul.mubr.f32.gmra.mrb[0].mxu0 %v372
        %v491 = vpop.f32.mrb[0].mxu0
        %v492 = vadd.f32 %v331, %v491
        %v493 = vpop.f32.mrb[0].mxu0
        %494 = vmatprep.mubr.f32.mxu0 0.0
        %495 = vmatmul.mubr.f32.gmra.mrb[0].mxu0 %v375
        %v496 = vpop.f32.mrb[0].mxu0
        %v497 = vadd.f32 %v336, %v496
        %v498 = vpop.f32.mrb[0].mxu0
        %499 = vmatprep.mubr.f32.mxu0 0.0
        %500 = vmatmul.mubr.f32.gmra.mrb[0].mxu0 %v378
        %v501 = vpop.f32.mrb[0].mxu0
        %v502 = vadd.f32 %v341, %v501
        %v503 = vpop.f32.mrb[0].mxu0
        %504 = vdwg.mxu0
        %v505 = vmax.f32 %v447, 0.0
        %v506 = vmax.f32 %v452, 0.0
        %v507 = vmax.f32 %v457, 0.0
        %v508 = vmax.f32 %v462, 0.0
        %v509 = vmax.f32 %v467, 0.0
        %v510 = vmax.f32 %v472, 0.0
        %v511 = vmax.f32 %v477, 0.0
        %v512 = vmax.f32 %v482, 0.0
        %v513 = vmax.f32 %v487, 0.0
        %v514 = vmax.f32 %v492, 0.0
        %v515 = vmax.f32 %v497, 0.0
        %v516 = vmax.f32 %v502, 0.0
        %v517 = vld [vmem:[#allocation3 + $0x60] sm:$0xff]
        %v518 = vld [vmem:[#allocation3 + $0x68] sm:$0xff]
        %v519 = vld [vmem:[#allocation3 + $0x70] sm:$0xff]
        %v520 = vld [vmem:[#allocation3 + $0x78] sm:$0xff]
        %v521 = vld [vmem:[#allocation3 + $0x80] sm:$0xff]
        %v522 = vld [vmem:[#allocation3 + $0x88] sm:$0xff]
        %v523 = vld [vmem:[#allocation3 + $0x90] sm:$0xff]
        %v524 = vld [vmem:[#allocation3 + $0x98] sm:$0xff]
        %v525 = vld [vmem:[#allocation3 + $0xa0] sm:$0xff]
        %v526 = vld [vmem:[#allocation3 + $0xa8] sm:$0xff]
        %v527 = vld [vmem:[#allocation3 + $0xb0] sm:$0xff]
        %v528 = vld [vmem:[%s2 + $0x60] sm:$0xff]
        %v529 = vld [vmem:[%s2 + $0x68] sm:$0xff]
        %v530 = vld [vmem:[%s2 + $0x70] sm:$0xff]
        %v531 = vld [vmem:[%s2 + $0x78] sm:$0xff]
        %v532 = vld [vmem:[%s2 + $0x80] sm:$0xff]
        %v533 = vld [vmem:[%s2 + $0x88] sm:$0xff]
        %v534 = vld [vmem:[%s2 + $0x90] sm:$0xff]
        %v535 = vld [vmem:[%s2 + $0x98] sm:$0xff]
        %v536 = vld [vmem:[%s2 + $0xa0] sm:$0xff]
        %v537 = vld [vmem:[%s2 + $0xa8] sm:$0xff]
        %v538 = vld [vmem:[%s2 + $0xb0] sm:$0xff]
        %540 = vset.pattern.permute.xlu0 0
        %541 = vperm.xlu0 %540, %v528
        %v542 = vpop.permute.xlu0 %541
        %545 = vset.pattern.permute.xlu0 0
        %546 = vperm.xlu0 %545, %v529
        %v547 = vpop.permute.xlu0 %546
        %550 = vset.pattern.permute.xlu0 0
        %551 = vperm.xlu0 %550, %v530
        %v552 = vpop.permute.xlu0 %551
        %555 = vset.pattern.permute.xlu0 0
        %556 = vperm.xlu0 %555, %v531
        %v557 = vpop.permute.xlu0 %556
        %560 = vset.pattern.permute.xlu0 0
        %561 = vperm.xlu0 %560, %v532
        %v562 = vpop.permute.xlu0 %561
        %565 = vset.pattern.permute.xlu0 0
        %566 = vperm.xlu0 %565, %v533
        %v567 = vpop.permute.xlu0 %566
        %570 = vset.pattern.permute.xlu0 0
        %571 = vperm.xlu0 %570, %v534
        %v572 = vpop.permute.xlu0 %571
        %575 = vset.pattern.permute.xlu0 0
        %576 = vperm.xlu0 %575, %v535
        %v577 = vpop.permute.xlu0 %576
        %580 = vset.pattern.permute.xlu0 0
        %581 = vperm.xlu0 %580, %v536
        %v582 = vpop.permute.xlu0 %581
        %585 = vset.pattern.permute.xlu0 0
        %586 = vperm.xlu0 %585, %v537
        %v587 = vpop.permute.xlu0 %586
        %590 = vset.pattern.permute.xlu0 0
        %591 = vperm.xlu0 %590, %v538
        %v592 = vpop.permute.xlu0 %591
        %vm594 = vcmask 785408
        %v596 = vsel %vm594, %v517, 0
        %v599 = vsel %vm594, %v518, 0
        %v602 = vsel %vm594, %v519, 0
        %v605 = vsel %vm594, %v520, 0
        %v608 = vsel %vm594, %v521, 0
        %v611 = vsel %vm594, %v522, 0
        %v614 = vsel %vm594, %v523, 0
        %v617 = vsel %vm594, %v524, 0
        %v620 = vsel %vm594, %v525, 0
        %v623 = vsel %vm594, %v526, 0
        %v626 = vsel %vm594, %v527, 0
        %628 = vmatprep.subr.mxu0 0.0
        %629 = vmatpush1.msra.mxu0 %v505
        %630 = vmatprep.subr.mxu0 0.0
        %631 = vmatpush1.msra.mxu0 %v506
        %632 = vmatprep.subr.mxu0 0.0
        %633 = vmatpush1.msra.mxu0 %v507
        %634 = vmatprep.subr.mxu0 0.0
        %635 = vmatpush1.msra.mxu0 %v508
        %636 = vmatprep.subr.mxu0 0.0
        %637 = vmatpush1.msra.mxu0 %v509
        %638 = vmatprep.subr.mxu0 0.0
        %639 = vmatpush1.msra.mxu0 %v510
        %640 = vmatprep.subr.mxu0 0.0
        %641 = vmatpush1.msra.mxu0 %v511
        %642 = vmatprep.subr.mxu0 0.0
        %643 = vmatpush1.msra.mxu0 %v512
        %644 = vmatprep.subr.mxu0 0.0
        %645 = vmatpush1.msra.mxu0 %v513
        %646 = vmatprep.subr.mxu0 0.0
        %647 = vmatpush1.msra.mxu0 %v514
        %648 = vmatprep.subr.mxu0 0.0
        %649 = vmatpush1.msra.mxu0 %v515
        %650 = vmatprep.subr.mxu0 0.0
        %651 = vmatpush1.msra.mxu0 %v516
        %652 = vmatprep.subr.mxu0 0.0
        %653 = vmatpush1.msra.mxu0 0.0
        %654 = vmatprep.subr.mxu0 0.0
        %655 = vmatpush1.msra.mxu0 0.0
        %656 = vmatprep.subr.mxu0 0.0
        %657 = vmatpush1.msra.mxu0 0.0
        %658 = vmatprep.subr.mxu0 0.0
        %659 = vmatpush1.msra.mxu0 0.0
        %660 = vmatprep.subr.mxu0 0.0
        %661 = vmatpush1.msra.mxu0 0.0
        %662 = vmatprep.subr.mxu0 0.0
        %663 = vmatpush1.msra.mxu0 0.0
        %664 = vmatprep.subr.mxu0 0.0
        %665 = vmatpush1.msra.mxu0 0.0
        %666 = vmatprep.subr.mxu0 0.0
        %667 = vmatpush1.msra.mxu0 0.0
        %668 = vmatprep.subr.mxu0 0.0
        %669 = vmatpush1.msra.mxu0 0.0
        %670 = vmatprep.subr.mxu0 0.0
        %671 = vmatpush1.msra.mxu0 0.0
        %672 = vmatprep.subr.mxu0 0.0
        %673 = vmatpush1.msra.mxu0 0.0
        %674 = vmatprep.subr.mxu0 0.0
        %675 = vmatpush1.msra.mxu0 0.0
        %676 = vmatprep.subr.mxu0 0.0
        %677 = vmatpush1.msra.mxu0 0.0
        %678 = vmatprep.subr.mxu0 0.0
        %679 = vmatpush1.msra.mxu0 0.0
        %680 = vmatprep.subr.mxu0 0.0
        %681 = vmatpush1.msra.mxu0 0.0
        %682 = vmatprep.subr.mxu0 0.0
        %683 = vmatpush1.msra.mxu0 0.0
        %684 = vmatprep.subr.mxu0 0.0
        %685 = vmatpush1.msra.mxu0 0.0
        %686 = vmatprep.subr.mxu0 0.0
        %687 = vmatpush1.msra.mxu0 0.0
        %688 = vmatprep.subr.mxu0 0.0
        %689 = vmatpush1.msra.mxu0 0.0
        %690 = vmatprep.subr.mxu0 0.0
        %691 = vmatpush1.msra.mxu0 0.0
        %692 = vmatprep.mubr.f32.mxu0 0.0
        %693 = vmatmul.mubr.f32.gmra.mrb[0].mxu0 %v596
        %v694 = vpop.f32.mrb[0].mxu0
        %v695 = vadd.f32 %v542, %v694
        %v696 = vpop.f32.mrb[0].mxu0
        %697 = vmatprep.mubr.f32.mxu0 0.0
        %698 = vmatmul.mubr.f32.gmra.mrb[0].mxu0 %v599
        %v699 = vpop.f32.mrb[0].mxu0
        %v700 = vadd.f32 %v547, %v699
        %v701 = vpop.f32.mrb[0].mxu0
        %702 = vmatprep.mubr.f32.mxu0 0.0
        %703 = vmatmul.mubr.f32.gmra.mrb[0].mxu0 %v602
        %v704 = vpop.f32.mrb[0].mxu0
        %v705 = vadd.f32 %v552, %v704
        %v706 = vpop.f32.mrb[0].mxu0
        %707 = vmatprep.mubr.f32.mxu0 0.0
        %708 = vmatmul.mubr.f32.gmra.mrb[0].mxu0 %v605
        %v709 = vpop.f32.mrb[0].mxu0
        %v710 = vadd.f32 %v557, %v709
        %v711 = vpop.f32.mrb[0].mxu0
        %712 = vmatprep.mubr.f32.mxu0 0.0
        %713 = vmatmul.mubr.f32.gmra.mrb[0].mxu0 %v608
        %v714 = vpop.f32.mrb[0].mxu0
        %v715 = vadd.f32 %v562, %v714
        %v716 = vpop.f32.mrb[0].mxu0
        %717 = vmatprep.mubr.f32.mxu0 0.0
        %718 = vmatmul.mubr.f32.gmra.mrb[0].mxu0 %v611
        %v719 = vpop.f32.mrb[0].mxu0
        %v720 = vadd.f32 %v567, %v719
        %v721 = vpop.f32.mrb[0].mxu0
        %722 = vmatprep.mubr.f32.mxu0 0.0
        %723 = vmatmul.mubr.f32.gmra.mrb[0].mxu0 %v614
        %v724 = vpop.f32.mrb[0].mxu0
        %v725 = vadd.f32 %v572, %v724
        %v726 = vpop.f32.mrb[0].mxu0
        %727 = vmatprep.mubr.f32.mxu0 0.0
        %728 = vmatmul.mubr.f32.gmra.mrb[0].mxu0 %v617
        %v729 = vpop.f32.mrb[0].mxu0
        %v730 = vadd.f32 %v577, %v729
        %v731 = vpop.f32.mrb[0].mxu0
        %732 = vmatprep.mubr.f32.mxu0 0.0
        %733 = vmatmul.mubr.f32.gmra.mrb[0].mxu0 %v620
        %v734 = vpop.f32.mrb[0].mxu0
        %v735 = vadd.f32 %v582, %v734
        %v736 = vpop.f32.mrb[0].mxu0
        %737 = vmatprep.mubr.f32.mxu0 0.0
        %738 = vmatmul.mubr.f32.gmra.mrb[0].mxu0 %v623
        %v739 = vpop.f32.mrb[0].mxu0
        %v740 = vadd.f32 %v587, %v739
        %v741 = vpop.f32.mrb[0].mxu0
        %742 = vmatprep.mubr.f32.mxu0 0.0
        %743 = vmatmul.mubr.f32.gmra.mrb[0].mxu0 %v626
        %v744 = vpop.f32.mrb[0].mxu0
        %v745 = vadd.f32 %v592, %v744
        %v746 = vpop.f32.mrb[0].mxu0
        %747 = vdwg.mxu0
        %v748 = vmax.f32 %v695, 0.0
        %v749 = vmax.f32 %v700, 0.0
        %v750 = vmax.f32 %v705, 0.0
        %v751 = vmax.f32 %v710, 0.0
        %v752 = vmax.f32 %v715, 0.0
        %v753 = vmax.f32 %v720, 0.0
        %v754 = vmax.f32 %v725, 0.0
        %v755 = vmax.f32 %v730, 0.0
        %v756 = vmax.f32 %v735, 0.0
        %v757 = vmax.f32 %v740, 0.0
        %v758 = vmax.f32 %v745, 0.0
        %v759 = vld [vmem:[#allocation3 + $0xb8] sm:$0xff]
        %v760 = vld [vmem:[#allocation3 + $0xc0] sm:$0xff]
        %v761 = vld [vmem:[#allocation3 + $0xc8] sm:$0xff]
        %v762 = vld [vmem:[#allocation3 + $0xd0] sm:$0xff]
        %v763 = vld [vmem:[#allocation3 + $0xd8] sm:$0xff]
        %v764 = vld [vmem:[#allocation3 + $0xe0] sm:$0xff]
        %v765 = vld [vmem:[#allocation3 + $0xe8] sm:$0xff]
        %v766 = vld [vmem:[#allocation3 + $0xf0] sm:$0xff]
        %v767 = vld [vmem:[#allocation3 + $0xf8] sm:$0xff]
        %v768 = vld [vmem:[#allocation3 + $0x100] sm:$0xff]
        %v769 = vld [vmem:[%s2 + $0xb8] sm:$0xff]
        %v770 = vld [vmem:[%s2 + $0xc0] sm:$0xff]
        %v771 = vld [vmem:[%s2 + $0xc8] sm:$0xff]
        %v772 = vld [vmem:[%s2 + $0xd0] sm:$0xff]
        %v773 = vld [vmem:[%s2 + $0xd8] sm:$0xff]
        %v774 = vld [vmem:[%s2 + $0xe0] sm:$0xff]
        %v775 = vld [vmem:[%s2 + $0xe8] sm:$0xff]
        %v776 = vld [vmem:[%s2 + $0xf0] sm:$0xff]
        %v777 = vld [vmem:[%s2 + $0xf8] sm:$0xff]
        %v778 = vld [vmem:[%s2 + $0x100] sm:$0xff]
        %780 = vset.pattern.permute.xlu0 0
        %781 = vperm.xlu0 %780, %v769
        %v782 = vpop.permute.xlu0 %781
        %785 = vset.pattern.permute.xlu0 0
        %786 = vperm.xlu0 %785, %v770
        %v787 = vpop.permute.xlu0 %786
        %790 = vset.pattern.permute.xlu0 0
        %791 = vperm.xlu0 %790, %v771
        %v792 = vpop.permute.xlu0 %791
        %795 = vset.pattern.permute.xlu0 0
        %796 = vperm.xlu0 %795, %v772
        %v797 = vpop.permute.xlu0 %796
        %800 = vset.pattern.permute.xlu0 0
        %801 = vperm.xlu0 %800, %v773
        %v802 = vpop.permute.xlu0 %801
        %805 = vset.pattern.permute.xlu0 0
        %806 = vperm.xlu0 %805, %v774
        %v807 = vpop.permute.xlu0 %806
        %810 = vset.pattern.permute.xlu0 0
        %811 = vperm.xlu0 %810, %v775
        %v812 = vpop.permute.xlu0 %811
        %815 = vset.pattern.permute.xlu0 0
        %816 = vperm.xlu0 %815, %v776
        %v817 = vpop.permute.xlu0 %816
        %820 = vset.pattern.permute.xlu0 0
        %821 = vperm.xlu0 %820, %v777
        %v822 = vpop.permute.xlu0 %821
        %825 = vset.pattern.permute.xlu0 0
        %826 = vperm.xlu0 %825, %v778
        %v827 = vpop.permute.xlu0 %826
        %vm829 = vcmask 719872
        %v831 = vsel %vm829, %v759, 0
        %v834 = vsel %vm829, %v760, 0
        %v837 = vsel %vm829, %v761, 0
        %v840 = vsel %vm829, %v762, 0
        %v843 = vsel %vm829, %v763, 0
        %v846 = vsel %vm829, %v764, 0
        %v849 = vsel %vm829, %v765, 0
        %v852 = vsel %vm829, %v766, 0
        %v855 = vsel %vm829, %v767, 0
        %v858 = vsel %vm829, %v768, 0
        %860 = vmatprep.subr.mxu0 0.0
        %861 = vmatpush1.msra.mxu0 %v748
        %862 = vmatprep.subr.mxu0 0.0
        %863 = vmatpush1.msra.mxu0 %v749
        %864 = vmatprep.subr.mxu0 0.0
        %865 = vmatpush1.msra.mxu0 %v750
        %866 = vmatprep.subr.mxu0 0.0
        %867 = vmatpush1.msra.mxu0 %v751
        %868 = vmatprep.subr.mxu0 0.0
        %869 = vmatpush1.msra.mxu0 %v752
        %870 = vmatprep.subr.mxu0 0.0
        %871 = vmatpush1.msra.mxu0 %v753
        %872 = vmatprep.subr.mxu0 0.0
        %873 = vmatpush1.msra.mxu0 %v754
        %874 = vmatprep.subr.mxu0 0.0
        %875 = vmatpush1.msra.mxu0 %v755
        %876 = vmatprep.subr.mxu0 0.0
        %877 = vmatpush1.msra.mxu0 %v756
        %878 = vmatprep.subr.mxu0 0.0
        %879 = vmatpush1.msra.mxu0 %v757
        %880 = vmatprep.subr.mxu0 0.0
        %881 = vmatpush1.msra.mxu0 %v758
        %882 = vmatprep.subr.mxu0 0.0
        %883 = vmatpush1.msra.mxu0 0.0
        %884 = vmatprep.subr.mxu0 0.0
        %885 = vmatpush1.msra.mxu0 0.0
        %886 = vmatprep.subr.mxu0 0.0
        %887 = vmatpush1.msra.mxu0 0.0
        %888 = vmatprep.subr.mxu0 0.0
        %889 = vmatpush1.msra.mxu0 0.0
        %890 = vmatprep.subr.mxu0 0.0
        %891 = vmatpush1.msra.mxu0 0.0
        %892 = vmatprep.subr.mxu0 0.0
        %893 = vmatpush1.msra.mxu0 0.0
        %894 = vmatprep.subr.mxu0 0.0
        %895 = vmatpush1.msra.mxu0 0.0
        %896 = vmatprep.subr.mxu0 0.0
        %897 = vmatpush1.msra.mxu0 0.0
        %898 = vmatprep.subr.mxu0 0.0
        %899 = vmatpush1.msra.mxu0 0.0
        %900 = vmatprep.subr.mxu0 0.0
        %901 = vmatpush1.msra.mxu0 0.0
        %902 = vmatprep.subr.mxu0 0.0
        %903 = vmatpush1.msra.mxu0 0.0
        %904 = vmatprep.subr.mxu0 0.0
        %905 = vmatpush1.msra.mxu0 0.0
        %906 = vmatprep.subr.mxu0 0.0
        %907 = vmatpush1.msra.mxu0 0.0
        %908 = vmatprep.subr.mxu0 0.0
        %909 = vmatpush1.msra.mxu0 0.0
        %910 = vmatprep.subr.mxu0 0.0
        %911 = vmatpush1.msra.mxu0 0.0
        %912 = vmatprep.subr.mxu0 0.0
        %913 = vmatpush1.msra.mxu0 0.0
        %914 = vmatprep.subr.mxu0 0.0
        %915 = vmatpush1.msra.mxu0 0.0
        %916 = vmatprep.subr.mxu0 0.0
        %917 = vmatpush1.msra.mxu0 0.0
        %918 = vmatprep.subr.mxu0 0.0
        %919 = vmatpush1.msra.mxu0 0.0
        %920 = vmatprep.subr.mxu0 0.0
        %921 = vmatpush1.msra.mxu0 0.0
        %922 = vmatprep.subr.mxu0 0.0
        %923 = vmatpush1.msra.mxu0 0.0
        %924 = vmatprep.mubr.f32.mxu0 0.0
        %925 = vmatmul.mubr.f32.gmra.mrb[0].mxu0 %v831
        %v926 = vpop.f32.mrb[0].mxu0
        %v927 = vadd.f32 %v782, %v926
        %v928 = vpop.f32.mrb[0].mxu0
        %929 = vmatprep.mubr.f32.mxu0 0.0
        %930 = vmatmul.mubr.f32.gmra.mrb[0].mxu0 %v834
        %v931 = vpop.f32.mrb[0].mxu0
        %v932 = vadd.f32 %v787, %v931
        %v933 = vpop.f32.mrb[0].mxu0
        %934 = vmatprep.mubr.f32.mxu0 0.0
        %935 = vmatmul.mubr.f32.gmra.mrb[0].mxu0 %v837
        %v936 = vpop.f32.mrb[0].mxu0
        %v937 = vadd.f32 %v792, %v936
        %v938 = vpop.f32.mrb[0].mxu0
        %939 = vmatprep.mubr.f32.mxu0 0.0
        %940 = vmatmul.mubr.f32.gmra.mrb[0].mxu0 %v840
        %v941 = vpop.f32.mrb[0].mxu0
        %v942 = vadd.f32 %v797, %v941
        %v943 = vpop.f32.mrb[0].mxu0
        %944 = vmatprep.mubr.f32.mxu0 0.0
        %945 = vmatmul.mubr.f32.gmra.mrb[0].mxu0 %v843
        %v946 = vpop.f32.mrb[0].mxu0
        %v947 = vadd.f32 %v802, %v946
        %v948 = vpop.f32.mrb[0].mxu0
        %949 = vmatprep.mubr.f32.mxu0 0.0
        %950 = vmatmul.mubr.f32.gmra.mrb[0].mxu0 %v846
        %v951 = vpop.f32.mrb[0].mxu0
        %v952 = vadd.f32 %v807, %v951
        %v953 = vpop.f32.mrb[0].mxu0
        %954 = vmatprep.mubr.f32.mxu0 0.0
        %955 = vmatmul.mubr.f32.gmra.mrb[0].mxu0 %v849
        %v956 = vpop.f32.mrb[0].mxu0
        %v957 = vadd.f32 %v812, %v956
        %v958 = vpop.f32.mrb[0].mxu0
        %959 = vmatprep.mubr.f32.mxu0 0.0
        %960 = vmatmul.mubr.f32.gmra.mrb[0].mxu0 %v852
        %v961 = vpop.f32.mrb[0].mxu0
        %v962 = vadd.f32 %v817, %v961
        %v963 = vpop.f32.mrb[0].mxu0
        %964 = vmatprep.mubr.f32.mxu0 0.0
        %965 = vmatmul.mubr.f32.gmra.mrb[0].mxu0 %v855
        %v966 = vpop.f32.mrb[0].mxu0
        %v967 = vadd.f32 %v822, %v966
        %v968 = vpop.f32.mrb[0].mxu0
        %969 = vmatprep.mubr.f32.mxu0 0.0
        %970 = vmatmul.mubr.f32.gmra.mrb[0].mxu0 %v858
        %v971 = vpop.f32.mrb[0].mxu0
        %v972 = vadd.f32 %v827, %v971
        %v973 = vpop.f32.mrb[0].mxu0
        %974 = vdwg.mxu0
        %v975 = vmax.f32 %v927, 0.0
        %v976 = vmax.f32 %v932, 0.0
        %v977 = vmax.f32 %v937, 0.0
        %v978 = vmax.f32 %v942, 0.0
        %v979 = vmax.f32 %v947, 0.0
        %v980 = vmax.f32 %v952, 0.0
        %v981 = vmax.f32 %v957, 0.0
        %v982 = vmax.f32 %v962, 0.0
        %v983 = vmax.f32 %v967, 0.0
        %v984 = vmax.f32 %v972, 0.0
        %v985 = vld [vmem:[#allocation3 + $0x108] sm:$0xff]
        %v986 = vld [vmem:[#allocation3 + $0x110] sm:$0xff]
        %v987 = vld [vmem:[#allocation3 + $0x118] sm:$0xff]
        %v988 = vld [vmem:[#allocation3 + $0x120] sm:$0xff]
        %v989 = vld [vmem:[#allocation3 + $0x128] sm:$0xff]
        %v990 = vld [vmem:[#allocation3 + $0x130] sm:$0xff]
        %v991 = vld [vmem:[#allocation3 + $0x138] sm:$0xff]
        %v992 = vld [vmem:[#allocation3 + $0x140] sm:$0xff]
        %v993 = vld [vmem:[%s2 + $0x108] sm:$0xff]
        %v994 = vld [vmem:[%s2 + $0x110] sm:$0xff]
        %v995 = vld [vmem:[%s2 + $0x118] sm:$0xff]
        %v996 = vld [vmem:[%s2 + $0x120] sm:$0xff]
        %v997 = vld [vmem:[%s2 + $0x128] sm:$0xff]
        %v998 = vld [vmem:[%s2 + $0x130] sm:$0xff]
        %v999 = vld [vmem:[%s2 + $0x138] sm:$0xff]
        %v1000 = vld [vmem:[%s2 + $0x140] sm:$0xff]
        %1002 = vset.pattern.permute.xlu0 0
        %1003 = vperm.xlu0 %1002, %v993
        %v1004 = vpop.permute.xlu0 %1003
        %1007 = vset.pattern.permute.xlu0 0
        %1008 = vperm.xlu0 %1007, %v994
        %v1009 = vpop.permute.xlu0 %1008
        %1012 = vset.pattern.permute.xlu0 0
        %1013 = vperm.xlu0 %1012, %v995
        %v1014 = vpop.permute.xlu0 %1013
        %1017 = vset.pattern.permute.xlu0 0
        %1018 = vperm.xlu0 %1017, %v996
        %v1019 = vpop.permute.xlu0 %1018
        %1022 = vset.pattern.permute.xlu0 0
        %1023 = vperm.xlu0 %1022, %v997
        %v1024 = vpop.permute.xlu0 %1023
        %1027 = vset.pattern.permute.xlu0 0
        %1028 = vperm.xlu0 %1027, %v998
        %v1029 = vpop.permute.xlu0 %1028
        %1032 = vset.pattern.permute.xlu0 0
        %1033 = vperm.xlu0 %1032, %v999
        %v1034 = vpop.permute.xlu0 %1033
        %1037 = vset.pattern.permute.xlu0 0
        %1038 = vperm.xlu0 %1037, %v1000
        %v1039 = vpop.permute.xlu0 %1038
        %vm1041 = vcmask 654336
        %v1043 = vsel %vm1041, %v985, 0
        %v1046 = vsel %vm1041, %v986, 0
        %v1049 = vsel %vm1041, %v987, 0
        %v1052 = vsel %vm1041, %v988, 0
        %v1055 = vsel %vm1041, %v989, 0
        %v1058 = vsel %vm1041, %v990, 0
        %v1061 = vsel %vm1041, %v991, 0
        %v1064 = vsel %vm1041, %v992, 0
        %1066 = vmatprep.subr.mxu0 0.0
        %1067 = vmatpush1.msra.mxu0 %v975
        %1068 = vmatprep.subr.mxu0 0.0
        %1069 = vmatpush1.msra.mxu0 %v976
        %1070 = vmatprep.subr.mxu0 0.0
        %1071 = vmatpush1.msra.mxu0 %v977
        %1072 = vmatprep.subr.mxu0 0.0
        %1073 = vmatpush1.msra.mxu0 %v978
        %1074 = vmatprep.subr.mxu0 0.0
        %1075 = vmatpush1.msra.mxu0 %v979
        %1076 = vmatprep.subr.mxu0 0.0
        %1077 = vmatpush1.msra.mxu0 %v980
        %1078 = vmatprep.subr.mxu0 0.0
        %1079 = vmatpush1.msra.mxu0 %v981
        %1080 = vmatprep.subr.mxu0 0.0
        %1081 = vmatpush1.msra.mxu0 %v982
        %1082 = vmatprep.subr.mxu0 0.0
        %1083 = vmatpush1.msra.mxu0 %v983
        %1084 = vmatprep.subr.mxu0 0.0
        %1085 = vmatpush1.msra.mxu0 %v984
        %1086 = vmatprep.subr.mxu0 0.0
        %1087 = vmatpush1.msra.mxu0 0.0
        %1088 = vmatprep.subr.mxu0 0.0
        %1089 = vmatpush1.msra.mxu0 0.0
        %1090 = vmatprep.subr.mxu0 0.0
        %1091 = vmatpush1.msra.mxu0 0.0
        %1092 = vmatprep.subr.mxu0 0.0
        %1093 = vmatpush1.msra.mxu0 0.0
        %1094 = vmatprep.subr.mxu0 0.0
        %1095 = vmatpush1.msra.mxu0 0.0
        %1096 = vmatprep.subr.mxu0 0.0
        %1097 = vmatpush1.msra.mxu0 0.0
        %1098 = vmatprep.subr.mxu0 0.0
        %1099 = vmatpush1.msra.mxu0 0.0
        %1100 = vmatprep.subr.mxu0 0.0
        %1101 = vmatpush1.msra.mxu0 0.0
        %1102 = vmatprep.subr.mxu0 0.0
        %1103 = vmatpush1.msra.mxu0 0.0
        %1104 = vmatprep.subr.mxu0 0.0
        %1105 = vmatpush1.msra.mxu0 0.0
        %1106 = vmatprep.subr.mxu0 0.0
        %1107 = vmatpush1.msra.mxu0 0.0
        %1108 = vmatprep.subr.mxu0 0.0
        %1109 = vmatpush1.msra.mxu0 0.0
        %1110 = vmatprep.subr.mxu0 0.0
        %1111 = vmatpush1.msra.mxu0 0.0
        %1112 = vmatprep.subr.mxu0 0.0
        %1113 = vmatpush1.msra.mxu0 0.0
        %1114 = vmatprep.subr.mxu0 0.0
        %1115 = vmatpush1.msra.mxu0 0.0
        %1116 = vmatprep.subr.mxu0 0.0
        %1117 = vmatpush1.msra.mxu0 0.0
        %1118 = vmatprep.subr.mxu0 0.0
        %1119 = vmatpush1.msra.mxu0 0.0
        %1120 = vmatprep.subr.mxu0 0.0
        %1121 = vmatpush1.msra.mxu0 0.0
        %1122 = vmatprep.subr.mxu0 0.0
        %1123 = vmatpush1.msra.mxu0 0.0
        %1124 = vmatprep.subr.mxu0 0.0
        %1125 = vmatpush1.msra.mxu0 0.0
        %1126 = vmatprep.subr.mxu0 0.0
        %1127 = vmatpush1.msra.mxu0 0.0
        %1128 = vmatprep.subr.mxu0 0.0
        %1129 = vmatpush1.msra.mxu0 0.0
        %1130 = vmatprep.mubr.f32.mxu0 0.0
        %1131 = vmatmul.mubr.f32.gmra.mrb[0].mxu0 %v1043
        %v1132 = vpop.f32.mrb[0].mxu0
        %v1133 = vadd.f32 %v1004, %v1132
        %v1134 = vpop.f32.mrb[0].mxu0
        %1135 = vmatprep.mubr.f32.mxu0 0.0
        %1136 = vmatmul.mubr.f32.gmra.mrb[0].mxu0 %v1046
        %v1137 = vpop.f32.mrb[0].mxu0
        %v1138 = vadd.f32 %v1009, %v1137
        %v1139 = vpop.f32.mrb[0].mxu0
        %1140 = vmatprep.mubr.f32.mxu0 0.0
        %1141 = vmatmul.mubr.f32.gmra.mrb[0].mxu0 %v1049
        %v1142 = vpop.f32.mrb[0].mxu0
        %v1143 = vadd.f32 %v1014, %v1142
        %v1144 = vpop.f32.mrb[0].mxu0
        %1145 = vmatprep.mubr.f32.mxu0 0.0
        %1146 = vmatmul.mubr.f32.gmra.mrb[0].mxu0 %v1052
        %v1147 = vpop.f32.mrb[0].mxu0
        %v1148 = vadd.f32 %v1019, %v1147
        %v1149 = vpop.f32.mrb[0].mxu0
        %1150 = vmatprep.mubr.f32.mxu0 0.0
        %1151 = vmatmul.mubr.f32.gmra.mrb[0].mxu0 %v1055
        %v1152 = vpop.f32.mrb[0].mxu0
        %v1153 = vadd.f32 %v1024, %v1152
        %v1154 = vpop.f32.mrb[0].mxu0
        %1155 = vmatprep.mubr.f32.mxu0 0.0
        %1156 = vmatmul.mubr.f32.gmra.mrb[0].mxu0 %v1058
        %v1157 = vpop.f32.mrb[0].mxu0
        %v1158 = vadd.f32 %v1029, %v1157
        %v1159 = vpop.f32.mrb[0].mxu0
        %1160 = vmatprep.mubr.f32.mxu0 0.0
        %1161 = vmatmul.mubr.f32.gmra.mrb[0].mxu0 %v1061
        %v1162 = vpop.f32.mrb[0].mxu0
        %v1163 = vadd.f32 %v1034, %v1162
        %v1164 = vpop.f32.mrb[0].mxu0
        %1165 = vmatprep.mubr.f32.mxu0 0.0
        %1166 = vmatmul.mubr.f32.gmra.mrb[0].mxu0 %v1064
        %v1167 = vpop.f32.mrb[0].mxu0
        %v1168 = vadd.f32 %v1039, %v1167
        %v1169 = vpop.f32.mrb[0].mxu0
        %1170 = vdwg.mxu0
        %v1171 = vmax.f32 %v1133, 0.0
        %v1172 = vmax.f32 %v1138, 0.0
        %v1173 = vmax.f32 %v1143, 0.0
        %v1174 = vmax.f32 %v1148, 0.0
        %v1175 = vmax.f32 %v1153, 0.0
        %v1176 = vmax.f32 %v1158, 0.0
        %v1177 = vmax.f32 %v1163, 0.0
        %v1178 = vmax.f32 %v1168, 0.0
        %v1179 = vld [vmem:[#allocation3 + $0x148] sm:$0xff]
        %v1180 = vld [vmem:[#allocation3 + $0x150] sm:$0xff]
        %v1181 = vld [vmem:[#allocation3 + $0x158] sm:$0xff]
        %v1182 = vld [vmem:[%s2 + $0x148] sm:$0xff]
        %v1183 = vld [vmem:[%s2 + $0x150] sm:$0xff]
        %v1184 = vld [vmem:[%s2 + $0x158] sm:$0xff]
        %1186 = vset.pattern.permute.xlu0 0
        %1187 = vperm.xlu0 %1186, %v1182
        %v1188 = vpop.permute.xlu0 %1187
        %1191 = vset.pattern.permute.xlu0 0
        %1192 = vperm.xlu0 %1191, %v1183
        %v1193 = vpop.permute.xlu0 %1192
        %1196 = vset.pattern.permute.xlu0 0
        %1197 = vperm.xlu0 %1196, %v1184
        %v1198 = vpop.permute.xlu0 %1197
        %vm1200 = vcmask 523264
        %v1202 = vsel %vm1200, %v1179, 0
        %v1205 = vsel %vm1200, %v1180, 0
        %v1208 = vsel %vm1200, %v1181, 0
        %1210 = vmatprep.subr.mxu0 0.0
        %1211 = vmatpush1.msra.mxu0 %v1171
        %1212 = vmatprep.subr.mxu0 0.0
        %1213 = vmatpush1.msra.mxu0 %v1172
        %1214 = vmatprep.subr.mxu0 0.0
        %1215 = vmatpush1.msra.mxu0 %v1173
        %1216 = vmatprep.subr.mxu0 0.0
        %1217 = vmatpush1.msra.mxu0 %v1174
        %1218 = vmatprep.subr.mxu0 0.0
        %1219 = vmatpush1.msra.mxu0 %v1175
        %1220 = vmatprep.subr.mxu0 0.0
        %1221 = vmatpush1.msra.mxu0 %v1176
        %1222 = vmatprep.subr.mxu0 0.0
        %1223 = vmatpush1.msra.mxu0 %v1177
        %1224 = vmatprep.subr.mxu0 0.0
        %1225 = vmatpush1.msra.mxu0 %v1178
        %1226 = vmatprep.subr.mxu0 0.0
        %1227 = vmatpush1.msra.mxu0 0.0
        %1228 = vmatprep.subr.mxu0 0.0
        %1229 = vmatpush1.msra.mxu0 0.0
        %1230 = vmatprep.subr.mxu0 0.0
        %1231 = vmatpush1.msra.mxu0 0.0
        %1232 = vmatprep.subr.mxu0 0.0
        %1233 = vmatpush1.msra.mxu0 0.0
        %1234 = vmatprep.subr.mxu0 0.0
        %1235 = vmatpush1.msra.mxu0 0.0
        %1236 = vmatprep.subr.mxu0 0.0
        %1237 = vmatpush1.msra.mxu0 0.0
        %1238 = vmatprep.subr.mxu0 0.0
        %1239 = vmatpush1.msra.mxu0 0.0
        %1240 = vmatprep.subr.mxu0 0.0
        %1241 = vmatpush1.msra.mxu0 0.0
        %1242 = vmatprep.subr.mxu0 0.0
        %1243 = vmatpush1.msra.mxu0 0.0
        %1244 = vmatprep.subr.mxu0 0.0
        %1245 = vmatpush1.msra.mxu0 0.0
        %1246 = vmatprep.subr.mxu0 0.0
        %1247 = vmatpush1.msra.mxu0 0.0
        %1248 = vmatprep.subr.mxu0 0.0
        %1249 = vmatpush1.msra.mxu0 0.0
        %1250 = vmatprep.subr.mxu0 0.0
        %1251 = vmatpush1.msra.mxu0 0.0
        %1252 = vmatprep.subr.mxu0 0.0
        %1253 = vmatpush1.msra.mxu0 0.0
        %1254 = vmatprep.subr.mxu0 0.0
        %1255 = vmatpush1.msra.mxu0 0.0
        %1256 = vmatprep.subr.mxu0 0.0
        %1257 = vmatpush1.msra.mxu0 0.0
        %1258 = vmatprep.subr.mxu0 0.0
        %1259 = vmatpush1.msra.mxu0 0.0
        %1260 = vmatprep.subr.mxu0 0.0
        %1261 = vmatpush1.msra.mxu0 0.0
        %1262 = vmatprep.subr.mxu0 0.0
        %1263 = vmatpush1.msra.mxu0 0.0
        %1264 = vmatprep.subr.mxu0 0.0
        %1265 = vmatpush1.msra.mxu0 0.0
        %1266 = vmatprep.subr.mxu0 0.0
        %1267 = vmatpush1.msra.mxu0 0.0
        %1268 = vmatprep.subr.mxu0 0.0
        %1269 = vmatpush1.msra.mxu0 0.0
        %1270 = vmatprep.subr.mxu0 0.0
        %1271 = vmatpush1.msra.mxu0 0.0
        %1272 = vmatprep.subr.mxu0 0.0
        %1273 = vmatpush1.msra.mxu0 0.0
        %1274 = vmatprep.mubr.f32.mxu0 0.0
        %1275 = vmatmul.mubr.f32.gmra.mrb[0].mxu0 %v1202
        %v1276 = vpop.f32.mrb[0].mxu0
        %v1277 = vadd.f32 %v1188, %v1276
        %v1278 = vpop.f32.mrb[0].mxu0
        %1279 = vmatprep.mubr.f32.mxu0 0.0
        %1280 = vmatmul.mubr.f32.gmra.mrb[0].mxu0 %v1205
        %v1281 = vpop.f32.mrb[0].mxu0
        %v1282 = vadd.f32 %v1193, %v1281
        %v1283 = vpop.f32.mrb[0].mxu0
        %1284 = vmatprep.mubr.f32.mxu0 0.0
        %1285 = vmatmul.mubr.f32.gmra.mrb[0].mxu0 %v1208
        %v1286 = vpop.f32.mrb[0].mxu0
        %v1287 = vadd.f32 %v1198, %v1286
        %v1288 = vpop.f32.mrb[0].mxu0
        %1289 = vdwg.mxu0
        %v1290 = vmax.f32 %v1277, 0.0
        %v1291 = vmax.f32 %v1282, 0.0
        %v1292 = vmax.f32 %v1287, 0.0
        %v1293 = vld [vmem:[#allocation3 + $0x160] sm:$0xff]
        %v1294 = vld [vmem:[#allocation3 + $0x168] sm:$0xff]
        %v1295 = vld [vmem:[#allocation3 + $0x170] sm:$0xff]
        %v1296 = vld [vmem:[#allocation3 + $0x178] sm:$0xff]
        %v1297 = vld [vmem:[%s2 + $0x160] sm:$0xff]
        %v1298 = vld [vmem:[%s2 + $0x168] sm:$0xff]
        %v1299 = vld [vmem:[%s2 + $0x170] sm:$0xff]
        %v1300 = vld [vmem:[%s2 + $0x178] sm:$0xff]
        %1302 = vset.pattern.permute.xlu0 0
        %1303 = vperm.xlu0 %1302, %v1297
        %v1304 = vpop.permute.xlu0 %1303
        %1307 = vset.pattern.permute.xlu0 0
        %1308 = vperm.xlu0 %1307, %v1298
        %v1309 = vpop.permute.xlu0 %1308
        %1312 = vset.pattern.permute.xlu0 0
        %1313 = vperm.xlu0 %1312, %v1299
        %v1314 = vpop.permute.xlu0 %1313
        %1317 = vset.pattern.permute.xlu0 0
        %1318 = vperm.xlu0 %1317, %v1300
        %v1319 = vpop.permute.xlu0 %1318
        %vm1321 = vcmask 195584
        %v1323 = vsel %vm1321, %v1293, 0
        %v1326 = vsel %vm1321, %v1294, 0
        %v1329 = vsel %vm1321, %v1295, 0
        %v1332 = vsel %vm1321, %v1296, 0
        %1334 = vmatprep.subr.mxu0 0.0
        %1335 = vmatpush1.msra.mxu0 %v1290
        %1336 = vmatprep.subr.mxu0 0.0
        %1337 = vmatpush1.msra.mxu0 %v1291
        %1338 = vmatprep.subr.mxu0 0.0
        %1339 = vmatpush1.msra.mxu0 %v1292
        %1340 = vmatprep.subr.mxu0 0.0
        %1341 = vmatpush1.msra.mxu0 0.0
        %1342 = vmatprep.subr.mxu0 0.0
        %1343 = vmatpush1.msra.mxu0 0.0
        %1344 = vmatprep.subr.mxu0 0.0
        %1345 = vmatpush1.msra.mxu0 0.0
        %1346 = vmatprep.subr.mxu0 0.0
        %1347 = vmatpush1.msra.mxu0 0.0
        %1348 = vmatprep.subr.mxu0 0.0
        %1349 = vmatpush1.msra.mxu0 0.0
        %1350 = vmatprep.subr.mxu0 0.0
        %1351 = vmatpush1.msra.mxu0 0.0
        %1352 = vmatprep.subr.mxu0 0.0
        %1353 = vmatpush1.msra.mxu0 0.0
        %1354 = vmatprep.subr.mxu0 0.0
        %1355 = vmatpush1.msra.mxu0 0.0
        %1356 = vmatprep.subr.mxu0 0.0
        %1357 = vmatpush1.msra.mxu0 0.0
        %1358 = vmatprep.subr.mxu0 0.0
        %1359 = vmatpush1.msra.mxu0 0.0
        %1360 = vmatprep.subr.mxu0 0.0
        %1361 = vmatpush1.msra.mxu0 0.0
        %1362 = vmatprep.subr.mxu0 0.0
        %1363 = vmatpush1.msra.mxu0 0.0
        %1364 = vmatprep.subr.mxu0 0.0
        %1365 = vmatpush1.msra.mxu0 0.0
        %1366 = vmatprep.subr.mxu0 0.0
        %1367 = vmatpush1.msra.mxu0 0.0
        %1368 = vmatprep.subr.mxu0 0.0
        %1369 = vmatpush1.msra.mxu0 0.0
        %1370 = vmatprep.subr.mxu0 0.0
        %1371 = vmatpush1.msra.mxu0 0.0
        %1372 = vmatprep.subr.mxu0 0.0
        %1373 = vmatpush1.msra.mxu0 0.0
        %1374 = vmatprep.subr.mxu0 0.0
        %1375 = vmatpush1.msra.mxu0 0.0
        %1376 = vmatprep.subr.mxu0 0.0
        %1377 = vmatpush1.msra.mxu0 0.0
        %1378 = vmatprep.subr.mxu0 0.0
        %1379 = vmatpush1.msra.mxu0 0.0
        %1380 = vmatprep.subr.mxu0 0.0
        %1381 = vmatpush1.msra.mxu0 0.0
        %1382 = vmatprep.subr.mxu0 0.0
        %1383 = vmatpush1.msra.mxu0 0.0
        %1384 = vmatprep.subr.mxu0 0.0
        %1385 = vmatpush1.msra.mxu0 0.0
        %1386 = vmatprep.subr.mxu0 0.0
        %1387 = vmatpush1.msra.mxu0 0.0
        %1388 = vmatprep.subr.mxu0 0.0
        %1389 = vmatpush1.msra.mxu0 0.0
        %1390 = vmatprep.subr.mxu0 0.0
        %1391 = vmatpush1.msra.mxu0 0.0
        %1392 = vmatprep.subr.mxu0 0.0
        %1393 = vmatpush1.msra.mxu0 0.0
        %1394 = vmatprep.subr.mxu0 0.0
        %1395 = vmatpush1.msra.mxu0 0.0
        %1396 = vmatprep.subr.mxu0 0.0
        %1397 = vmatpush1.msra.mxu0 0.0
        %1398 = vmatprep.mubr.f32.mxu0 0.0
        %1399 = vmatmul.mubr.f32.gmra.mrb[0].mxu0 %v1323
        %v1400 = vpop.f32.mrb[0].mxu0
        %v1401 = vadd.f32 %v1304, %v1400
        %v1402 = vpop.f32.mrb[0].mxu0
        %1403 = vmatprep.mubr.f32.mxu0 0.0
        %1404 = vmatmul.mubr.f32.gmra.mrb[0].mxu0 %v1326
        %v1405 = vpop.f32.mrb[0].mxu0
        %v1406 = vadd.f32 %v1309, %v1405
        %v1407 = vpop.f32.mrb[0].mxu0
        %1408 = vmatprep.mubr.f32.mxu0 0.0
        %1409 = vmatmul.mubr.f32.gmra.mrb[0].mxu0 %v1329
        %v1410 = vpop.f32.mrb[0].mxu0
        %v1411 = vadd.f32 %v1314, %v1410
        %v1412 = vpop.f32.mrb[0].mxu0
        %1413 = vmatprep.mubr.f32.mxu0 0.0
        %1414 = vmatmul.mubr.f32.gmra.mrb[0].mxu0 %v1332
        %v1415 = vpop.f32.mrb[0].mxu0
        %v1416 = vadd.f32 %v1319, %v1415
        %v1417 = vpop.f32.mrb[0].mxu0
        %1418 = vdwg.mxu0
        %v1419 = vmax.f32 %v1401, 0.0
        %v1420 = vmax.f32 %v1406, 0.0
        %v1421 = vmax.f32 %v1411, 0.0
        %v1422 = vmax.f32 %v1416, 0.0
        %v1423 = vld [vmem:[#allocation3 + $0x180] sm:$0xff]
        %v1424 = vld [vmem:[#allocation3 + $0x188] sm:$0xff]
        %v1425 = vld [vmem:[#allocation3 + $0x190] sm:$0xff]
        %v1426 = vld [vmem:[#allocation3 + $0x198] sm:$0xff]
        %v1427 = vld [vmem:[#allocation3 + $0x1a0] sm:$0xff]
        %v1428 = vld [vmem:[#allocation3 + $0x1a8] sm:$0xff]
        %v1429 = vld [vmem:[#allocation3 + $0x1b0] sm:$0xff]
        %v1430 = vld [vmem:[#allocation3 + $0x1b8] sm:$0xff]
        %vm1431 = vcmask 261120
        %v1433 = vsel %vm1431, %v1427, 0
        %v1436 = vsel %vm1431, %v1428, 0
        %v1439 = vsel %vm1431, %v1429, 0
        %v1442 = vsel %vm1431, %v1430, 0
        %1444 = vmatprep.subr.mxu0 0.0
        %1445 = vmatpush1.msra.mxu0 %v1419
        %1446 = vmatprep.subr.mxu0 0.0
        %1447 = vmatpush1.msra.mxu0 %v1420
        %1448 = vmatprep.subr.mxu0 0.0
        %1449 = vmatpush1.msra.mxu0 %v1421
        %1450 = vmatprep.subr.mxu0 0.0
        %1451 = vmatpush1.msra.mxu0 %v1422
        %1452 = vmatprep.subr.mxu0 0.0
        %1453 = vmatpush1.msra.mxu0 0.0
        %1454 = vmatprep.subr.mxu0 0.0
        %1455 = vmatpush1.msra.mxu0 0.0
        %1456 = vmatprep.subr.mxu0 0.0
        %1457 = vmatpush1.msra.mxu0 0.0
        %1458 = vmatprep.subr.mxu0 0.0
        %1459 = vmatpush1.msra.mxu0 0.0
        %1460 = vmatprep.subr.mxu0 0.0
        %1461 = vmatpush1.msra.mxu0 0.0
        %1462 = vmatprep.subr.mxu0 0.0
        %1463 = vmatpush1.msra.mxu0 0.0
        %1464 = vmatprep.subr.mxu0 0.0
        %1465 = vmatpush1.msra.mxu0 0.0
        %1466 = vmatprep.subr.mxu0 0.0
        %1467 = vmatpush1.msra.mxu0 0.0
        %1468 = vmatprep.subr.mxu0 0.0
        %1469 = vmatpush1.msra.mxu0 0.0
        %1470 = vmatprep.subr.mxu0 0.0
        %1471 = vmatpush1.msra.mxu0 0.0
        %1472 = vmatprep.subr.mxu0 0.0
        %1473 = vmatpush1.msra.mxu0 0.0
        %1474 = vmatprep.subr.mxu0 0.0
        %1475 = vmatpush1.msra.mxu0 0.0
        %1476 = vmatprep.subr.mxu0 0.0
        %1477 = vmatpush1.msra.mxu0 0.0
        %1478 = vmatprep.subr.mxu0 0.0
        %1479 = vmatpush1.msra.mxu0 0.0
        %1480 = vmatprep.subr.mxu0 0.0
        %1481 = vmatpush1.msra.mxu0 0.0
        %1482 = vmatprep.subr.mxu0 0.0
        %1483 = vmatpush1.msra.mxu0 0.0
        %1484 = vmatprep.subr.mxu0 0.0
        %1485 = vmatpush1.msra.mxu0 0.0
        %1486 = vmatprep.subr.mxu0 0.0
        %1487 = vmatpush1.msra.mxu0 0.0
        %1488 = vmatprep.subr.mxu0 0.0
        %1489 = vmatpush1.msra.mxu0 0.0
        %1490 = vmatprep.subr.mxu0 0.0
        %1491 = vmatpush1.msra.mxu0 0.0
        %1492 = vmatprep.subr.mxu0 0.0
        %1493 = vmatpush1.msra.mxu0 0.0
        %1494 = vmatprep.subr.mxu0 0.0
        %1495 = vmatpush1.msra.mxu0 0.0
        %1496 = vmatprep.subr.mxu0 0.0
        %1497 = vmatpush1.msra.mxu0 0.0
        %1498 = vmatprep.subr.mxu0 0.0
        %1499 = vmatpush1.msra.mxu0 0.0
        %1500 = vmatprep.subr.mxu0 0.0
        %1501 = vmatpush1.msra.mxu0 0.0
        %1502 = vmatprep.subr.mxu0 0.0
        %1503 = vmatpush1.msra.mxu0 0.0
        %1504 = vmatprep.subr.mxu0 0.0
        %1505 = vmatpush1.msra.mxu0 0.0
        %1506 = vmatprep.subr.mxu0 0.0
        %1507 = vmatpush1.msra.mxu0 0.0
        %1508 = vmatprep.mubr.f32.mxu0 0.0
        %1509 = vmatmul.mubr.f32.gmra.mrb[0].mxu0 %v1433
        %v1510 = vpop.f32.mrb[0].mxu0
        %v1511 = vadd.f32 0.0, %v1510
        %v1512 = vpop.f32.mrb[0].mxu0
        %1513 = vmatprep.mubr.f32.mxu0 0.0
        %1514 = vmatmul.mubr.f32.gmra.mrb[0].mxu0 %v1436
        %v1515 = vpop.f32.mrb[0].mxu0
        %v1516 = vadd.f32 0.0, %v1515
        %v1517 = vpop.f32.mrb[0].mxu0
        %1518 = vmatprep.mubr.f32.mxu0 0.0
        %1519 = vmatmul.mubr.f32.gmra.mrb[0].mxu0 %v1439
        %v1520 = vpop.f32.mrb[0].mxu0
        %v1521 = vadd.f32 0.0, %v1520
        %v1522 = vpop.f32.mrb[0].mxu0
        %1523 = vmatprep.mubr.f32.mxu0 0.0
        %1524 = vmatmul.mubr.f32.gmra.mrb[0].mxu0 %v1442
        %v1525 = vpop.f32.mrb[0].mxu0
        %v1526 = vadd.f32 0.0, %v1525
        %v1527 = vpop.f32.mrb[0].mxu0
        %1528 = vdwg.mxu0
        %v1530 = vsel %vm1200, %v1423, 0
        %v1533 = vsel %vm1200, %v1424, 0
        %v1536 = vsel %vm1200, %v1425, 0
        %v1539 = vsel %vm1200, %v1426, 0
        %1541 = vmatprep.subr.mxu0 0.0
        %1542 = vmatpush1.msra.mxu0 %v1171
        %1543 = vmatprep.subr.mxu0 0.0
        %1544 = vmatpush1.msra.mxu0 %v1172
        %1545 = vmatprep.subr.mxu0 0.0
        %1546 = vmatpush1.msra.mxu0 %v1173
        %1547 = vmatprep.subr.mxu0 0.0
        %1548 = vmatpush1.msra.mxu0 %v1174
        %1549 = vmatprep.subr.mxu0 0.0
        %1550 = vmatpush1.msra.mxu0 %v1175
        %1551 = vmatprep.subr.mxu0 0.0
        %1552 = vmatpush1.msra.mxu0 %v1176
        %1553 = vmatprep.subr.mxu0 0.0
        %1554 = vmatpush1.msra.mxu0 %v1177
        %1555 = vmatprep.subr.mxu0 0.0
        %1556 = vmatpush1.msra.mxu0 %v1178
        %1557 = vmatprep.subr.mxu0 0.0
        %1558 = vmatpush1.msra.mxu0 0.0
        %1559 = vmatprep.subr.mxu0 0.0
        %1560 = vmatpush1.msra.mxu0 0.0
        %1561 = vmatprep.subr.mxu0 0.0
        %1562 = vmatpush1.msra.mxu0 0.0
        %1563 = vmatprep.subr.mxu0 0.0
        %1564 = vmatpush1.msra.mxu0 0.0
        %1565 = vmatprep.subr.mxu0 0.0
        %1566 = vmatpush1.msra.mxu0 0.0
        %1567 = vmatprep.subr.mxu0 0.0
        %1568 = vmatpush1.msra.mxu0 0.0
        %1569 = vmatprep.subr.mxu0 0.0
        %1570 = vmatpush1.msra.mxu0 0.0
        %1571 = vmatprep.subr.mxu0 0.0
        %1572 = vmatpush1.msra.mxu0 0.0
        %1573 = vmatprep.subr.mxu0 0.0
        %1574 = vmatpush1.msra.mxu0 0.0
        %1575 = vmatprep.subr.mxu0 0.0
        %1576 = vmatpush1.msra.mxu0 0.0
        %1577 = vmatprep.subr.mxu0 0.0
        %1578 = vmatpush1.msra.mxu0 0.0
        %1579 = vmatprep.subr.mxu0 0.0
        %1580 = vmatpush1.msra.mxu0 0.0
        %1581 = vmatprep.subr.mxu0 0.0
        %1582 = vmatpush1.msra.mxu0 0.0
        %1583 = vmatprep.subr.mxu0 0.0
        %1584 = vmatpush1.msra.mxu0 0.0
        %1585 = vmatprep.subr.mxu0 0.0
        %1586 = vmatpush1.msra.mxu0 0.0
        %1587 = vmatprep.subr.mxu0 0.0
        %1588 = vmatpush1.msra.mxu0 0.0
        %1589 = vmatprep.subr.mxu0 0.0
        %1590 = vmatpush1.msra.mxu0 0.0
        %1591 = vmatprep.subr.mxu0 0.0
        %1592 = vmatpush1.msra.mxu0 0.0
        %1593 = vmatprep.subr.mxu0 0.0
        %1594 = vmatpush1.msra.mxu0 0.0
        %1595 = vmatprep.subr.mxu0 0.0
        %1596 = vmatpush1.msra.mxu0 0.0
        %1597 = vmatprep.subr.mxu0 0.0
        %1598 = vmatpush1.msra.mxu0 0.0
        %1599 = vmatprep.subr.mxu0 0.0
        %1600 = vmatpush1.msra.mxu0 0.0
        %1601 = vmatprep.subr.mxu0 0.0
        %1602 = vmatpush1.msra.mxu0 0.0
        %1603 = vmatprep.subr.mxu0 0.0
        %1604 = vmatpush1.msra.mxu0 0.0
        %1605 = vmatprep.mubr.f32.mxu0 0.0
        %1606 = vmatmul.mubr.f32.gmra.mrb[0].mxu0 %v1530
        %v1607 = vpop.f32.mrb[0].mxu0
        %v1608 = vadd.f32 %v1511, %v1607
        %v1609 = vpop.f32.mrb[0].mxu0
        %1610 = vmatprep.mubr.f32.mxu0 0.0
        %1611 = vmatmul.mubr.f32.gmra.mrb[0].mxu0 %v1533
        %v1612 = vpop.f32.mrb[0].mxu0
        %v1613 = vadd.f32 %v1516, %v1612
        %v1614 = vpop.f32.mrb[0].mxu0
        %1615 = vmatprep.mubr.f32.mxu0 0.0
        %1616 = vmatmul.mubr.f32.gmra.mrb[0].mxu0 %v1536
        %v1617 = vpop.f32.mrb[0].mxu0
        %v1618 = vadd.f32 %v1521, %v1617
        %v1619 = vpop.f32.mrb[0].mxu0
        %1620 = vmatprep.mubr.f32.mxu0 0.0
        %1621 = vmatmul.mubr.f32.gmra.mrb[0].mxu0 %v1539
        %v1622 = vpop.f32.mrb[0].mxu0
        %v1623 = vadd.f32 %v1526, %v1622
        %v1624 = vpop.f32.mrb[0].mxu0
        %1625 = vdwg.mxu0
        %v1626 = vld [vmem:[%s2 + $0x180] sm:$0xff]
        %v1627 = vld [vmem:[%s2 + $0x188] sm:$0xff]
        %v1628 = vld [vmem:[%s2 + $0x190] sm:$0xff]
        %v1629 = vld [vmem:[%s2 + $0x198] sm:$0xff]
        %1631 = vset.pattern.permute.xlu0 0
        %1632 = vperm.xlu0 %1631, %v1626
        %v1633 = vpop.permute.xlu0 %1632
        %1636 = vset.pattern.permute.xlu0 0
        %1637 = vperm.xlu0 %1636, %v1627
        %v1638 = vpop.permute.xlu0 %1637
        %1641 = vset.pattern.permute.xlu0 0
        %1642 = vperm.xlu0 %1641, %v1628
        %v1643 = vpop.permute.xlu0 %1642
        %1646 = vset.pattern.permute.xlu0 0
        %1647 = vperm.xlu0 %1646, %v1629
        %v1648 = vpop.permute.xlu0 %1647
        %v1650 = vadd.f32 %v1608, %v1633
        %v1651 = vadd.f32 %v1613, %v1638
        %v1652 = vadd.f32 %v1618, %v1643
        %v1653 = vadd.f32 %v1623, %v1648
        %v1654 = vmax.f32 %v1650, 0.0
        %v1655 = vmax.f32 %v1651, 0.0
        %v1656 = vmax.f32 %v1652, 0.0
        %v1657 = vmax.f32 %v1653, 0.0
        %v1658 = vld [vmem:[#allocation3 + $0x1c0] sm:$0xff]
        %v1659 = vld [vmem:[#allocation3 + $0x1c8] sm:$0xff]
        %v1660 = vld [vmem:[#allocation3 + $0x1d0] sm:$0xff]
        %v1661 = vld [vmem:[#allocation3 + $0x1d8] sm:$0xff]
        %v1662 = vld [vmem:[#allocation3 + $0x1e0] sm:$0xff]
        %v1663 = vld [vmem:[#allocation3 + $0x1e8] sm:$0xff]
        %v1664 = vld [vmem:[#allocation3 + $0x1f0] sm:$0xff]
        %v1665 = vld [vmem:[#allocation3 + $0x1f8] sm:$0xff]
        %v1666 = vld [vmem:[#allocation3 + $0x200] sm:$0xff]
        %v1667 = vld [vmem:[#allocation3 + $0x208] sm:$0xff]
        %v1669 = vsel %vm1431, %v1663, 0
        %v1672 = vsel %vm1431, %v1664, 0
        %v1675 = vsel %vm1431, %v1665, 0
        %v1678 = vsel %vm1431, %v1666, 0
        %v1681 = vsel %vm1431, %v1667, 0
        %1683 = vmatprep.subr.mxu0 0.0
        %1684 = vmatpush1.msra.mxu0 %v1654
        %1685 = vmatprep.subr.mxu0 0.0
        %1686 = vmatpush1.msra.mxu0 %v1655
        %1687 = vmatprep.subr.mxu0 0.0
        %1688 = vmatpush1.msra.mxu0 %v1656
        %1689 = vmatprep.subr.mxu0 0.0
        %1690 = vmatpush1.msra.mxu0 %v1657
        %1691 = vmatprep.subr.mxu0 0.0
        %1692 = vmatpush1.msra.mxu0 0.0
        %1693 = vmatprep.subr.mxu0 0.0
        %1694 = vmatpush1.msra.mxu0 0.0
        %1695 = vmatprep.subr.mxu0 0.0
        %1696 = vmatpush1.msra.mxu0 0.0
        %1697 = vmatprep.subr.mxu0 0.0
        %1698 = vmatpush1.msra.mxu0 0.0
        %1699 = vmatprep.subr.mxu0 0.0
        %1700 = vmatpush1.msra.mxu0 0.0
        %1701 = vmatprep.subr.mxu0 0.0
        %1702 = vmatpush1.msra.mxu0 0.0
        %1703 = vmatprep.subr.mxu0 0.0
        %1704 = vmatpush1.msra.mxu0 0.0
        %1705 = vmatprep.subr.mxu0 0.0
        %1706 = vmatpush1.msra.mxu0 0.0
        %1707 = vmatprep.subr.mxu0 0.0
        %1708 = vmatpush1.msra.mxu0 0.0
        %1709 = vmatprep.subr.mxu0 0.0
        %1710 = vmatpush1.msra.mxu0 0.0
        %1711 = vmatprep.subr.mxu0 0.0
        %1712 = vmatpush1.msra.mxu0 0.0
        %1713 = vmatprep.subr.mxu0 0.0
        %1714 = vmatpush1.msra.mxu0 0.0
        %1715 = vmatprep.subr.mxu0 0.0
        %1716 = vmatpush1.msra.mxu0 0.0
        %1717 = vmatprep.subr.mxu0 0.0
        %1718 = vmatpush1.msra.mxu0 0.0
        %1719 = vmatprep.subr.mxu0 0.0
        %1720 = vmatpush1.msra.mxu0 0.0
        %1721 = vmatprep.subr.mxu0 0.0
        %1722 = vmatpush1.msra.mxu0 0.0
        %1723 = vmatprep.subr.mxu0 0.0
        %1724 = vmatpush1.msra.mxu0 0.0
        %1725 = vmatprep.subr.mxu0 0.0
        %1726 = vmatpush1.msra.mxu0 0.0
        %1727 = vmatprep.subr.mxu0 0.0
        %1728 = vmatpush1.msra.mxu0 0.0
        %1729 = vmatprep.subr.mxu0 0.0
        %1730 = vmatpush1.msra.mxu0 0.0
        %1731 = vmatprep.subr.mxu0 0.0
        %1732 = vmatpush1.msra.mxu0 0.0
        %1733 = vmatprep.subr.mxu0 0.0
        %1734 = vmatpush1.msra.mxu0 0.0
        %1735 = vmatprep.subr.mxu0 0.0
        %1736 = vmatpush1.msra.mxu0 0.0
        %1737 = vmatprep.subr.mxu0 0.0
        %1738 = vmatpush1.msra.mxu0 0.0
        %1739 = vmatprep.subr.mxu0 0.0
        %1740 = vmatpush1.msra.mxu0 0.0
        %1741 = vmatprep.subr.mxu0 0.0
        %1742 = vmatpush1.msra.mxu0 0.0
        %1743 = vmatprep.subr.mxu0 0.0
        %1744 = vmatpush1.msra.mxu0 0.0
        %1745 = vmatprep.subr.mxu0 0.0
        %1746 = vmatpush1.msra.mxu0 0.0
        %1747 = vmatprep.mubr.f32.mxu0 0.0
        %1748 = vmatmul.mubr.f32.gmra.mrb[0].mxu0 %v1669
        %v1749 = vpop.f32.mrb[0].mxu0
        %v1750 = vadd.f32 0.0, %v1749
        %v1751 = vpop.f32.mrb[0].mxu0
        %1752 = vmatprep.mubr.f32.mxu0 0.0
        %1753 = vmatmul.mubr.f32.gmra.mrb[0].mxu0 %v1672
        %v1754 = vpop.f32.mrb[0].mxu0
        %v1755 = vadd.f32 0.0, %v1754
        %v1756 = vpop.f32.mrb[0].mxu0
        %1757 = vmatprep.mubr.f32.mxu0 0.0
        %1758 = vmatmul.mubr.f32.gmra.mrb[0].mxu0 %v1675
        %v1759 = vpop.f32.mrb[0].mxu0
        %v1760 = vadd.f32 0.0, %v1759
        %v1761 = vpop.f32.mrb[0].mxu0
        %1762 = vmatprep.mubr.f32.mxu0 0.0
        %1763 = vmatmul.mubr.f32.gmra.mrb[0].mxu0 %v1678
        %v1764 = vpop.f32.mrb[0].mxu0
        %v1765 = vadd.f32 0.0, %v1764
        %v1766 = vpop.f32.mrb[0].mxu0
        %1767 = vmatprep.mubr.f32.mxu0 0.0
        %1768 = vmatmul.mubr.f32.gmra.mrb[0].mxu0 %v1681
        %v1769 = vpop.f32.mrb[0].mxu0
        %v1770 = vadd.f32 0.0, %v1769
        %v1771 = vpop.f32.mrb[0].mxu0
        %1772 = vdwg.mxu0
        %v1774 = vsel %vm1041, %v1658, 0
        %v1777 = vsel %vm1041, %v1659, 0
        %v1780 = vsel %vm1041, %v1660, 0
        %v1783 = vsel %vm1041, %v1661, 0
        %v1786 = vsel %vm1041, %v1662, 0
        %1788 = vmatprep.subr.mxu0 0.0
        %1789 = vmatpush1.msra.mxu0 %v975
        %1790 = vmatprep.subr.mxu0 0.0
        %1791 = vmatpush1.msra.mxu0 %v976
        %1792 = vmatprep.subr.mxu0 0.0
        %1793 = vmatpush1.msra.mxu0 %v977
        %1794 = vmatprep.subr.mxu0 0.0
        %1795 = vmatpush1.msra.mxu0 %v978
        %1796 = vmatprep.subr.mxu0 0.0
        %1797 = vmatpush1.msra.mxu0 %v979
        %1798 = vmatprep.subr.mxu0 0.0
        %1799 = vmatpush1.msra.mxu0 %v980
        %1800 = vmatprep.subr.mxu0 0.0
        %1801 = vmatpush1.msra.mxu0 %v981
        %1802 = vmatprep.subr.mxu0 0.0
        %1803 = vmatpush1.msra.mxu0 %v982
        %1804 = vmatprep.subr.mxu0 0.0
        %1805 = vmatpush1.msra.mxu0 %v983
        %1806 = vmatprep.subr.mxu0 0.0
        %1807 = vmatpush1.msra.mxu0 %v984
        %1808 = vmatprep.subr.mxu0 0.0
        %1809 = vmatpush1.msra.mxu0 0.0
        %1810 = vmatprep.subr.mxu0 0.0
        %1811 = vmatpush1.msra.mxu0 0.0
        %1812 = vmatprep.subr.mxu0 0.0
        %1813 = vmatpush1.msra.mxu0 0.0
        %1814 = vmatprep.subr.mxu0 0.0
        %1815 = vmatpush1.msra.mxu0 0.0
        %1816 = vmatprep.subr.mxu0 0.0
        %1817 = vmatpush1.msra.mxu0 0.0
        %1818 = vmatprep.subr.mxu0 0.0
        %1819 = vmatpush1.msra.mxu0 0.0
        %1820 = vmatprep.subr.mxu0 0.0
        %1821 = vmatpush1.msra.mxu0 0.0
        %1822 = vmatprep.subr.mxu0 0.0
        %1823 = vmatpush1.msra.mxu0 0.0
        %1824 = vmatprep.subr.mxu0 0.0
        %1825 = vmatpush1.msra.mxu0 0.0
        %1826 = vmatprep.subr.mxu0 0.0
        %1827 = vmatpush1.msra.mxu0 0.0
        %1828 = vmatprep.subr.mxu0 0.0
        %1829 = vmatpush1.msra.mxu0 0.0
        %1830 = vmatprep.subr.mxu0 0.0
        %1831 = vmatpush1.msra.mxu0 0.0
        %1832 = vmatprep.subr.mxu0 0.0
        %1833 = vmatpush1.msra.mxu0 0.0
        %1834 = vmatprep.subr.mxu0 0.0
        %1835 = vmatpush1.msra.mxu0 0.0
        %1836 = vmatprep.subr.mxu0 0.0
        %1837 = vmatpush1.msra.mxu0 0.0
        %1838 = vmatprep.subr.mxu0 0.0
        %1839 = vmatpush1.msra.mxu0 0.0
        %1840 = vmatprep.subr.mxu0 0.0
        %1841 = vmatpush1.msra.mxu0 0.0
        %1842 = vmatprep.subr.mxu0 0.0
        %1843 = vmatpush1.msra.mxu0 0.0
        %1844 = vmatprep.subr.mxu0 0.0
        %1845 = vmatpush1.msra.mxu0 0.0
        %1846 = vmatprep.subr.mxu0 0.0
        %1847 = vmatpush1.msra.mxu0 0.0
        %1848 = vmatprep.subr.mxu0 0.0
        %1849 = vmatpush1.msra.mxu0 0.0
        %1850 = vmatprep.subr.mxu0 0.0
        %1851 = vmatpush1.msra.mxu0 0.0
        %1852 = vmatprep.mubr.f32.mxu0 0.0
        %1853 = vmatmul.mubr.f32.gmra.mrb[0].mxu0 %v1774
        %v1854 = vpop.f32.mrb[0].mxu0
        %v1855 = vadd.f32 %v1750, %v1854
        %v1856 = vpop.f32.mrb[0].mxu0
        %1857 = vmatprep.mubr.f32.mxu0 0.0
        %1858 = vmatmul.mubr.f32.gmra.mrb[0].mxu0 %v1777
        %v1859 = vpop.f32.mrb[0].mxu0
        %v1860 = vadd.f32 %v1755, %v1859
        %v1861 = vpop.f32.mrb[0].mxu0
        %1862 = vmatprep.mubr.f32.mxu0 0.0
        %1863 = vmatmul.mubr.f32.gmra.mrb[0].mxu0 %v1780
        %v1864 = vpop.f32.mrb[0].mxu0
        %v1865 = vadd.f32 %v1760, %v1864
        %v1866 = vpop.f32.mrb[0].mxu0
        %1867 = vmatprep.mubr.f32.mxu0 0.0
        %1868 = vmatmul.mubr.f32.gmra.mrb[0].mxu0 %v1783
        %v1869 = vpop.f32.mrb[0].mxu0
        %v1870 = vadd.f32 %v1765, %v1869
        %v1871 = vpop.f32.mrb[0].mxu0
        %1872 = vmatprep.mubr.f32.mxu0 0.0
        %1873 = vmatmul.mubr.f32.gmra.mrb[0].mxu0 %v1786
        %v1874 = vpop.f32.mrb[0].mxu0
        %v1875 = vadd.f32 %v1770, %v1874
        %v1876 = vpop.f32.mrb[0].mxu0
        %1877 = vdwg.mxu0
        %v1878 = vld [vmem:[%s2 + $0x1a0] sm:$0xff]
        %v1879 = vld [vmem:[%s2 + $0x1a8] sm:$0xff]
        %v1880 = vld [vmem:[%s2 + $0x1b0] sm:$0xff]
        %v1881 = vld [vmem:[%s2 + $0x1b8] sm:$0xff]
        %v1882 = vld [vmem:[%s2 + $0x1c0] sm:$0xff]
        %1884 = vset.pattern.permute.xlu0 0
        %1885 = vperm.xlu0 %1884, %v1878
        %v1886 = vpop.permute.xlu0 %1885
        %1889 = vset.pattern.permute.xlu0 0
        %1890 = vperm.xlu0 %1889, %v1879
        %v1891 = vpop.permute.xlu0 %1890
        %1894 = vset.pattern.permute.xlu0 0
        %1895 = vperm.xlu0 %1894, %v1880
        %v1896 = vpop.permute.xlu0 %1895
        %1899 = vset.pattern.permute.xlu0 0
        %1900 = vperm.xlu0 %1899, %v1881
        %v1901 = vpop.permute.xlu0 %1900
        %1904 = vset.pattern.permute.xlu0 0
        %1905 = vperm.xlu0 %1904, %v1882
        %v1906 = vpop.permute.xlu0 %1905
        %v1908 = vadd.f32 %v1855, %v1886
        %v1909 = vadd.f32 %v1860, %v1891
        %v1910 = vadd.f32 %v1865, %v1896
        %v1911 = vadd.f32 %v1870, %v1901
        %v1912 = vadd.f32 %v1875, %v1906
        %v1913 = vmax.f32 %v1908, 0.0
        %v1914 = vmax.f32 %v1909, 0.0
        %v1915 = vmax.f32 %v1910, 0.0
        %v1916 = vmax.f32 %v1911, 0.0
        %v1917 = vmax.f32 %v1912, 0.0
        %v1918 = vld [vmem:[#allocation3 + $0x210] sm:$0xff]
        %v1919 = vld [vmem:[#allocation3 + $0x218] sm:$0xff]
        %v1920 = vld [vmem:[#allocation3 + $0x220] sm:$0xff]
        %v1921 = vld [vmem:[#allocation3 + $0x228] sm:$0xff]
        %v1922 = vld [vmem:[#allocation3 + $0x230] sm:$0xff]
        %v1923 = vld [vmem:[#allocation3 + $0x238] sm:$0xff]
        %v1924 = vld [vmem:[#allocation3 + $0x240] sm:$0xff]
        %v1925 = vld [vmem:[#allocation3 + $0x248] sm:$0xff]
        %v1926 = vld [vmem:[#allocation3 + $0x250] sm:$0xff]
        %v1927 = vld [vmem:[#allocation3 + $0x258] sm:$0xff]
        %v1928 = vld [vmem:[#allocation3 + $0x260] sm:$0xff]
        %v1929 = vld [vmem:[#allocation3 + $0x268] sm:$0xff]
        %vm1930 = vcmask 326656
        %v1932 = vsel %vm1930, %v1924, 0
        %v1935 = vsel %vm1930, %v1925, 0
        %v1938 = vsel %vm1930, %v1926, 0
        %v1941 = vsel %vm1930, %v1927, 0
        %v1944 = vsel %vm1930, %v1928, 0
        %v1947 = vsel %vm1930, %v1929, 0
        %1949 = vmatprep.subr.mxu0 0.0
        %1950 = vmatpush1.msra.mxu0 %v1913
        %1951 = vmatprep.subr.mxu0 0.0
        %1952 = vmatpush1.msra.mxu0 %v1914
        %1953 = vmatprep.subr.mxu0 0.0
        %1954 = vmatpush1.msra.mxu0 %v1915
        %1955 = vmatprep.subr.mxu0 0.0
        %1956 = vmatpush1.msra.mxu0 %v1916
        %1957 = vmatprep.subr.mxu0 0.0
        %1958 = vmatpush1.msra.mxu0 %v1917
        %1959 = vmatprep.subr.mxu0 0.0
        %1960 = vmatpush1.msra.mxu0 0.0
        %1961 = vmatprep.subr.mxu0 0.0
        %1962 = vmatpush1.msra.mxu0 0.0
        %1963 = vmatprep.subr.mxu0 0.0
        %1964 = vmatpush1.msra.mxu0 0.0
        %1965 = vmatprep.subr.mxu0 0.0
        %1966 = vmatpush1.msra.mxu0 0.0
        %1967 = vmatprep.subr.mxu0 0.0
        %1968 = vmatpush1.msra.mxu0 0.0
        %1969 = vmatprep.subr.mxu0 0.0
        %1970 = vmatpush1.msra.mxu0 0.0
        %1971 = vmatprep.subr.mxu0 0.0
        %1972 = vmatpush1.msra.mxu0 0.0
        %1973 = vmatprep.subr.mxu0 0.0
        %1974 = vmatpush1.msra.mxu0 0.0
        %1975 = vmatprep.subr.mxu0 0.0
        %1976 = vmatpush1.msra.mxu0 0.0
        %1977 = vmatprep.subr.mxu0 0.0
        %1978 = vmatpush1.msra.mxu0 0.0
        %1979 = vmatprep.subr.mxu0 0.0
        %1980 = vmatpush1.msra.mxu0 0.0
        %1981 = vmatprep.subr.mxu0 0.0
        %1982 = vmatpush1.msra.mxu0 0.0
        %1983 = vmatprep.subr.mxu0 0.0
        %1984 = vmatpush1.msra.mxu0 0.0
        %1985 = vmatprep.subr.mxu0 0.0
        %1986 = vmatpush1.msra.mxu0 0.0
        %1987 = vmatprep.subr.mxu0 0.0
        %1988 = vmatpush1.msra.mxu0 0.0
        %1989 = vmatprep.subr.mxu0 0.0
        %1990 = vmatpush1.msra.mxu0 0.0
        %1991 = vmatprep.subr.mxu0 0.0
        %1992 = vmatpush1.msra.mxu0 0.0
        %1993 = vmatprep.subr.mxu0 0.0
        %1994 = vmatpush1.msra.mxu0 0.0
        %1995 = vmatprep.subr.mxu0 0.0
        %1996 = vmatpush1.msra.mxu0 0.0
        %1997 = vmatprep.subr.mxu0 0.0
        %1998 = vmatpush1.msra.mxu0 0.0
        %1999 = vmatprep.subr.mxu0 0.0
        %2000 = vmatpush1.msra.mxu0 0.0
        %2001 = vmatprep.subr.mxu0 0.0
        %2002 = vmatpush1.msra.mxu0 0.0
        %2003 = vmatprep.subr.mxu0 0.0
        %2004 = vmatpush1.msra.mxu0 0.0
        %2005 = vmatprep.subr.mxu0 0.0
        %2006 = vmatpush1.msra.mxu0 0.0
        %2007 = vmatprep.subr.mxu0 0.0
        %2008 = vmatpush1.msra.mxu0 0.0
        %2009 = vmatprep.subr.mxu0 0.0
        %2010 = vmatpush1.msra.mxu0 0.0
        %2011 = vmatprep.subr.mxu0 0.0
        %2012 = vmatpush1.msra.mxu0 0.0
        %2013 = vmatprep.mubr.f32.mxu0 0.0
        %2014 = vmatmul.mubr.f32.gmra.mrb[0].mxu0 %v1932
        %v2015 = vpop.f32.mrb[0].mxu0
        %v2016 = vadd.f32 0.0, %v2015
        %v2017 = vpop.f32.mrb[0].mxu0
        %2018 = vmatprep.mubr.f32.mxu0 0.0
        %2019 = vmatmul.mubr.f32.gmra.mrb[0].mxu0 %v1935
        %v2020 = vpop.f32.mrb[0].mxu0
        %v2021 = vadd.f32 0.0, %v2020
        %v2022 = vpop.f32.mrb[0].mxu0
        %2023 = vmatprep.mubr.f32.mxu0 0.0
        %2024 = vmatmul.mubr.f32.gmra.mrb[0].mxu0 %v1938
        %v2025 = vpop.f32.mrb[0].mxu0
        %v2026 = vadd.f32 0.0, %v2025
        %v2027 = vpop.f32.mrb[0].mxu0
        %2028 = vmatprep.mubr.f32.mxu0 0.0
        %2029 = vmatmul.mubr.f32.gmra.mrb[0].mxu0 %v1941
        %v2030 = vpop.f32.mrb[0].mxu0
        %v2031 = vadd.f32 0.0, %v2030
        %v2032 = vpop.f32.mrb[0].mxu0
        %2033 = vmatprep.mubr.f32.mxu0 0.0
        %2034 = vmatmul.mubr.f32.gmra.mrb[0].mxu0 %v1944
        %v2035 = vpop.f32.mrb[0].mxu0
        %v2036 = vadd.f32 0.0, %v2035
        %v2037 = vpop.f32.mrb[0].mxu0
        %2038 = vmatprep.mubr.f32.mxu0 0.0
        %2039 = vmatmul.mubr.f32.gmra.mrb[0].mxu0 %v1947
        %v2040 = vpop.f32.mrb[0].mxu0
        %v2041 = vadd.f32 0.0, %v2040
        %v2042 = vpop.f32.mrb[0].mxu0
        %2043 = vdwg.mxu0
        %v2045 = vsel %vm829, %v1918, 0
        %v2048 = vsel %vm829, %v1919, 0
        %v2051 = vsel %vm829, %v1920, 0
        %v2054 = vsel %vm829, %v1921, 0
        %v2057 = vsel %vm829, %v1922, 0
        %v2060 = vsel %vm829, %v1923, 0
        %2062 = vmatprep.subr.mxu0 0.0
        %2063 = vmatpush1.msra.mxu0 %v748
        %2064 = vmatprep.subr.mxu0 0.0
        %2065 = vmatpush1.msra.mxu0 %v749
        %2066 = vmatprep.subr.mxu0 0.0
        %2067 = vmatpush1.msra.mxu0 %v750
        %2068 = vmatprep.subr.mxu0 0.0
        %2069 = vmatpush1.msra.mxu0 %v751
        %2070 = vmatprep.subr.mxu0 0.0
        %2071 = vmatpush1.msra.mxu0 %v752
        %2072 = vmatprep.subr.mxu0 0.0
        %2073 = vmatpush1.msra.mxu0 %v753
        %2074 = vmatprep.subr.mxu0 0.0
        %2075 = vmatpush1.msra.mxu0 %v754
        %2076 = vmatprep.subr.mxu0 0.0
        %2077 = vmatpush1.msra.mxu0 %v755
        %2078 = vmatprep.subr.mxu0 0.0
        %2079 = vmatpush1.msra.mxu0 %v756
        %2080 = vmatprep.subr.mxu0 0.0
        %2081 = vmatpush1.msra.mxu0 %v757
        %2082 = vmatprep.subr.mxu0 0.0
        %2083 = vmatpush1.msra.mxu0 %v758
        %2084 = vmatprep.subr.mxu0 0.0
        %2085 = vmatpush1.msra.mxu0 0.0
        %2086 = vmatprep.subr.mxu0 0.0
        %2087 = vmatpush1.msra.mxu0 0.0
        %2088 = vmatprep.subr.mxu0 0.0
        %2089 = vmatpush1.msra.mxu0 0.0
        %2090 = vmatprep.subr.mxu0 0.0
        %2091 = vmatpush1.msra.mxu0 0.0
        %2092 = vmatprep.subr.mxu0 0.0
        %2093 = vmatpush1.msra.mxu0 0.0
        %2094 = vmatprep.subr.mxu0 0.0
        %2095 = vmatpush1.msra.mxu0 0.0
        %2096 = vmatprep.subr.mxu0 0.0
        %2097 = vmatpush1.msra.mxu0 0.0
        %2098 = vmatprep.subr.mxu0 0.0
        %2099 = vmatpush1.msra.mxu0 0.0
        %2100 = vmatprep.subr.mxu0 0.0
        %2101 = vmatpush1.msra.mxu0 0.0
        %2102 = vmatprep.subr.mxu0 0.0
        %2103 = vmatpush1.msra.mxu0 0.0
        %2104 = vmatprep.subr.mxu0 0.0
        %2105 = vmatpush1.msra.mxu0 0.0
        %2106 = vmatprep.subr.mxu0 0.0
        %2107 = vmatpush1.msra.mxu0 0.0
        %2108 = vmatprep.subr.mxu0 0.0
        %2109 = vmatpush1.msra.mxu0 0.0
        %2110 = vmatprep.subr.mxu0 0.0
        %2111 = vmatpush1.msra.mxu0 0.0
        %2112 = vmatprep.subr.mxu0 0.0
        %2113 = vmatpush1.msra.mxu0 0.0
        %2114 = vmatprep.subr.mxu0 0.0
        %2115 = vmatpush1.msra.mxu0 0.0
        %2116 = vmatprep.subr.mxu0 0.0
        %2117 = vmatpush1.msra.mxu0 0.0
        %2118 = vmatprep.subr.mxu0 0.0
        %2119 = vmatpush1.msra.mxu0 0.0
        %2120 = vmatprep.subr.mxu0 0.0
        %2121 = vmatpush1.msra.mxu0 0.0
        %2122 = vmatprep.subr.mxu0 0.0
        %2123 = vmatpush1.msra.mxu0 0.0
        %2124 = vmatprep.subr.mxu0 0.0
        %2125 = vmatpush1.msra.mxu0 0.0
        %2126 = vmatprep.mubr.f32.mxu0 0.0
        %2127 = vmatmul.mubr.f32.gmra.mrb[0].mxu0 %v2045
        %v2128 = vpop.f32.mrb[0].mxu0
        %v2129 = vadd.f32 %v2016, %v2128
        %v2130 = vpop.f32.mrb[0].mxu0
        %2131 = vmatprep.mubr.f32.mxu0 0.0
        %2132 = vmatmul.mubr.f32.gmra.mrb[0].mxu0 %v2048
        %v2133 = vpop.f32.mrb[0].mxu0
        %v2134 = vadd.f32 %v2021, %v2133
        %v2135 = vpop.f32.mrb[0].mxu0
        %2136 = vmatprep.mubr.f32.mxu0 0.0
        %2137 = vmatmul.mubr.f32.gmra.mrb[0].mxu0 %v2051
        %v2138 = vpop.f32.mrb[0].mxu0
        %v2139 = vadd.f32 %v2026, %v2138
        %v2140 = vpop.f32.mrb[0].mxu0
        %2141 = vmatprep.mubr.f32.mxu0 0.0
        %2142 = vmatmul.mubr.f32.gmra.mrb[0].mxu0 %v2054
        %v2143 = vpop.f32.mrb[0].mxu0
        %v2144 = vadd.f32 %v2031, %v2143
        %v2145 = vpop.f32.mrb[0].mxu0
        %2146 = vmatprep.mubr.f32.mxu0 0.0
        %2147 = vmatmul.mubr.f32.gmra.mrb[0].mxu0 %v2057
        %v2148 = vpop.f32.mrb[0].mxu0
        %v2149 = vadd.f32 %v2036, %v2148
        %v2150 = vpop.f32.mrb[0].mxu0
        %2151 = vmatprep.mubr.f32.mxu0 0.0
        %2152 = vmatmul.mubr.f32.gmra.mrb[0].mxu0 %v2060
        %v2153 = vpop.f32.mrb[0].mxu0
        %v2154 = vadd.f32 %v2041, %v2153
        %v2155 = vpop.f32.mrb[0].mxu0
        %2156 = vdwg.mxu0
        %v2157 = vld [vmem:[%s2 + $0x1c8] sm:$0xff]
        %v2158 = vld [vmem:[%s2 + $0x1d0] sm:$0xff]
        %v2159 = vld [vmem:[%s2 + $0x1d8] sm:$0xff]
        %v2160 = vld [vmem:[%s2 + $0x1e0] sm:$0xff]
        %v2161 = vld [vmem:[%s2 + $0x1e8] sm:$0xff]
        %v2162 = vld [vmem:[%s2 + $0x1f0] sm:$0xff]
        %2164 = vset.pattern.permute.xlu0 0
        %2165 = vperm.xlu0 %2164, %v2157
        %v2166 = vpop.permute.xlu0 %2165
        %2169 = vset.pattern.permute.xlu0 0
        %2170 = vperm.xlu0 %2169, %v2158
        %v2171 = vpop.permute.xlu0 %2170
        %2174 = vset.pattern.permute.xlu0 0
        %2175 = vperm.xlu0 %2174, %v2159
        %v2176 = vpop.permute.xlu0 %2175
        %2179 = vset.pattern.permute.xlu0 0
        %2180 = vperm.xlu0 %2179, %v2160
        %v2181 = vpop.permute.xlu0 %2180
        %2184 = vset.pattern.permute.xlu0 0
        %2185 = vperm.xlu0 %2184, %v2161
        %v2186 = vpop.permute.xlu0 %2185
        %2189 = vset.pattern.permute.xlu0 0
        %2190 = vperm.xlu0 %2189, %v2162
        %v2191 = vpop.permute.xlu0 %2190
        %v2193 = vadd.f32 %v2129, %v2166
        %v2194 = vadd.f32 %v2134, %v2171
        %v2195 = vadd.f32 %v2139, %v2176
        %v2196 = vadd.f32 %v2144, %v2181
        %v2197 = vadd.f32 %v2149, %v2186
        %v2198 = vadd.f32 %v2154, %v2191
        %v2199 = vmax.f32 %v2193, 0.0
        %v2200 = vmax.f32 %v2194, 0.0
        %v2201 = vmax.f32 %v2195, 0.0
        %v2202 = vmax.f32 %v2196, 0.0
        %v2203 = vmax.f32 %v2197, 0.0
        %v2204 = vmax.f32 %v2198, 0.0
        %v2205 = vld [vmem:[#allocation3 + $0x270] sm:$0xff]
        %v2206 = vld [vmem:[#allocation3 + $0x278] sm:$0xff]
        %v2207 = vld [vmem:[#allocation3 + $0x280] sm:$0xff]
        %v2208 = vld [vmem:[#allocation3 + $0x288] sm:$0xff]
        %v2209 = vld [vmem:[#allocation3 + $0x290] sm:$0xff]
        %v2210 = vld [vmem:[#allocation3 + $0x298] sm:$0xff]
        %v2211 = vld [vmem:[#allocation3 + $0x2a0] sm:$0xff]
        %v2212 = vld [vmem:[#allocation3 + $0x2a8] sm:$0xff]
        %v2213 = vld [vmem:[#allocation3 + $0x2b0] sm:$0xff]
        %v2214 = vld [vmem:[#allocation3 + $0x2b8] sm:$0xff]
        %v2215 = vld [vmem:[#allocation3 + $0x2c0] sm:$0xff]
        %v2216 = vld [vmem:[#allocation3 + $0x2c8] sm:$0xff]
        %v2217 = vld [vmem:[#allocation3 + $0x2d0] sm:$0xff]
        %v2218 = vld [vmem:[#allocation3 + $0x2d8] sm:$0xff]
        %v2219 = vld [vmem:[#allocation3 + $0x2e0] sm:$0xff]
        %v2220 = vld [vmem:[#allocation3 + $0x2e8] sm:$0xff]
        %v2221 = vld [vmem:[#allocation3 + $0x2f0] sm:$0xff]
        %v2222 = vld [vmem:[#allocation3 + $0x2f8] sm:$0xff]
        %vm2223 = vcmask 392192
        %v2225 = vsel %vm2223, %v2214, 0
        %v2228 = vsel %vm2223, %v2215, 0
        %v2231 = vsel %vm2223, %v2216, 0
        %v2234 = vsel %vm2223, %v2217, 0
        %v2237 = vsel %vm2223, %v2218, 0
        %v2240 = vsel %vm2223, %v2219, 0
        %v2243 = vsel %vm2223, %v2220, 0
        %v2246 = vsel %vm2223, %v2221, 0
        %v2249 = vsel %vm2223, %v2222, 0
        %2251 = vmatprep.subr.mxu0 0.0
        %2252 = vmatpush1.msra.mxu0 %v2199
        %2253 = vmatprep.subr.mxu0 0.0
        %2254 = vmatpush1.msra.mxu0 %v2200
        %2255 = vmatprep.subr.mxu0 0.0
        %2256 = vmatpush1.msra.mxu0 %v2201
        %2257 = vmatprep.subr.mxu0 0.0
        %2258 = vmatpush1.msra.mxu0 %v2202
        %2259 = vmatprep.subr.mxu0 0.0
        %2260 = vmatpush1.msra.mxu0 %v2203
        %2261 = vmatprep.subr.mxu0 0.0
        %2262 = vmatpush1.msra.mxu0 %v2204
        %2263 = vmatprep.subr.mxu0 0.0
        %2264 = vmatpush1.msra.mxu0 0.0
        %2265 = vmatprep.subr.mxu0 0.0
        %2266 = vmatpush1.msra.mxu0 0.0
        %2267 = vmatprep.subr.mxu0 0.0
        %2268 = vmatpush1.msra.mxu0 0.0
        %2269 = vmatprep.subr.mxu0 0.0
        %2270 = vmatpush1.msra.mxu0 0.0
        %2271 = vmatprep.subr.mxu0 0.0
        %2272 = vmatpush1.msra.mxu0 0.0
        %2273 = vmatprep.subr.mxu0 0.0
        %2274 = vmatpush1.msra.mxu0 0.0
        %2275 = vmatprep.subr.mxu0 0.0
        %2276 = vmatpush1.msra.mxu0 0.0
        %2277 = vmatprep.subr.mxu0 0.0
        %2278 = vmatpush1.msra.mxu0 0.0
        %2279 = vmatprep.subr.mxu0 0.0
        %2280 = vmatpush1.msra.mxu0 0.0
        %2281 = vmatprep.subr.mxu0 0.0
        %2282 = vmatpush1.msra.mxu0 0.0
        %2283 = vmatprep.subr.mxu0 0.0
        %2284 = vmatpush1.msra.mxu0 0.0
        %2285 = vmatprep.subr.mxu0 0.0
        %2286 = vmatpush1.msra.mxu0 0.0
        %2287 = vmatprep.subr.mxu0 0.0
        %2288 = vmatpush1.msra.mxu0 0.0
        %2289 = vmatprep.subr.mxu0 0.0
        %2290 = vmatpush1.msra.mxu0 0.0
        %2291 = vmatprep.subr.mxu0 0.0
        %2292 = vmatpush1.msra.mxu0 0.0
        %2293 = vmatprep.subr.mxu0 0.0
        %2294 = vmatpush1.msra.mxu0 0.0
        %2295 = vmatprep.subr.mxu0 0.0
        %2296 = vmatpush1.msra.mxu0 0.0
        %2297 = vmatprep.subr.mxu0 0.0
        %2298 = vmatpush1.msra.mxu0 0.0
        %2299 = vmatprep.subr.mxu0 0.0
        %2300 = vmatpush1.msra.mxu0 0.0
        %2301 = vmatprep.subr.mxu0 0.0
        %2302 = vmatpush1.msra.mxu0 0.0
        %2303 = vmatprep.subr.mxu0 0.0
        %2304 = vmatpush1.msra.mxu0 0.0
        %2305 = vmatprep.subr.mxu0 0.0
        %2306 = vmatpush1.msra.mxu0 0.0
        %2307 = vmatprep.subr.mxu0 0.0
        %2308 = vmatpush1.msra.mxu0 0.0
        %2309 = vmatprep.subr.mxu0 0.0
        %2310 = vmatpush1.msra.mxu0 0.0
        %2311 = vmatprep.subr.mxu0 0.0
        %2312 = vmatpush1.msra.mxu0 0.0
        %2313 = vmatprep.subr.mxu0 0.0
        %2314 = vmatpush1.msra.mxu0 0.0
        %2315 = vmatprep.mubr.f32.mxu0 0.0
        %2316 = vmatmul.mubr.f32.gmra.mrb[0].mxu0 %v2225
        %v2317 = vpop.f32.mrb[0].mxu0
        %v2318 = vadd.f32 0.0, %v2317
        %v2319 = vpop.f32.mrb[0].mxu0
        %2320 = vmatprep.mubr.f32.mxu0 0.0
        %2321 = vmatmul.mubr.f32.gmra.mrb[0].mxu0 %v2228
        %v2322 = vpop.f32.mrb[0].mxu0
        %v2323 = vadd.f32 0.0, %v2322
        %v2324 = vpop.f32.mrb[0].mxu0
        %2325 = vmatprep.mubr.f32.mxu0 0.0
        %2326 = vmatmul.mubr.f32.gmra.mrb[0].mxu0 %v2231
        %v2327 = vpop.f32.mrb[0].mxu0
        %v2328 = vadd.f32 0.0, %v2327
        %v2329 = vpop.f32.mrb[0].mxu0
        %2330 = vmatprep.mubr.f32.mxu0 0.0
        %2331 = vmatmul.mubr.f32.gmra.mrb[0].mxu0 %v2234
        %v2332 = vpop.f32.mrb[0].mxu0
        %v2333 = vadd.f32 0.0, %v2332
        %v2334 = vpop.f32.mrb[0].mxu0
        %2335 = vmatprep.mubr.f32.mxu0 0.0
        %2336 = vmatmul.mubr.f32.gmra.mrb[0].mxu0 %v2237
        %v2337 = vpop.f32.mrb[0].mxu0
        %v2338 = vadd.f32 0.0, %v2337
        %v2339 = vpop.f32.mrb[0].mxu0
        %2340 = vmatprep.mubr.f32.mxu0 0.0
        %2341 = vmatmul.mubr.f32.gmra.mrb[0].mxu0 %v2240
        %v2342 = vpop.f32.mrb[0].mxu0
        %v2343 = vadd.f32 0.0, %v2342
        %v2344 = vpop.f32.mrb[0].mxu0
        %2345 = vmatprep.mubr.f32.mxu0 0.0
        %2346 = vmatmul.mubr.f32.gmra.mrb[0].mxu0 %v2243
        %v2347 = vpop.f32.mrb[0].mxu0
        %v2348 = vadd.f32 0.0, %v2347
        %v2349 = vpop.f32.mrb[0].mxu0
        %2350 = vmatprep.mubr.f32.mxu0 0.0
        %2351 = vmatmul.mubr.f32.gmra.mrb[0].mxu0 %v2246
        %v2352 = vpop.f32.mrb[0].mxu0
        %v2353 = vadd.f32 0.0, %v2352
        %v2354 = vpop.f32.mrb[0].mxu0
        %2355 = vmatprep.mubr.f32.mxu0 0.0
        %2356 = vmatmul.mubr.f32.gmra.mrb[0].mxu0 %v2249
        %v2357 = vpop.f32.mrb[0].mxu0
        %v2358 = vadd.f32 0.0, %v2357
        %v2359 = vpop.f32.mrb[0].mxu0
        %2360 = vdwg.mxu0
        %v2362 = vsel %vm594, %v2205, 0
        %v2365 = vsel %vm594, %v2206, 0
        %v2368 = vsel %vm594, %v2207, 0
        %v2371 = vsel %vm594, %v2208, 0
        %v2374 = vsel %vm594, %v2209, 0
        %v2377 = vsel %vm594, %v2210, 0
        %v2380 = vsel %vm594, %v2211, 0
        %v2383 = vsel %vm594, %v2212, 0
        %v2386 = vsel %vm594, %v2213, 0
        %2388 = vmatprep.subr.mxu0 0.0
        %2389 = vmatpush1.msra.mxu0 %v505
        %2390 = vmatprep.subr.mxu0 0.0
        %2391 = vmatpush1.msra.mxu0 %v506
        %2392 = vmatprep.subr.mxu0 0.0
        %2393 = vmatpush1.msra.mxu0 %v507
        %2394 = vmatprep.subr.mxu0 0.0
        %2395 = vmatpush1.msra.mxu0 %v508
        %2396 = vmatprep.subr.mxu0 0.0
        %2397 = vmatpush1.msra.mxu0 %v509
        %2398 = vmatprep.subr.mxu0 0.0
        %2399 = vmatpush1.msra.mxu0 %v510
        %2400 = vmatprep.subr.mxu0 0.0
        %2401 = vmatpush1.msra.mxu0 %v511
        %2402 = vmatprep.subr.mxu0 0.0
        %2403 = vmatpush1.msra.mxu0 %v512
        %2404 = vmatprep.subr.mxu0 0.0
        %2405 = vmatpush1.msra.mxu0 %v513
        %2406 = vmatprep.subr.mxu0 0.0
        %2407 = vmatpush1.msra.mxu0 %v514
        %2408 = vmatprep.subr.mxu0 0.0
        %2409 = vmatpush1.msra.mxu0 %v515
        %2410 = vmatprep.subr.mxu0 0.0
        %2411 = vmatpush1.msra.mxu0 %v516
        %2412 = vmatprep.subr.mxu0 0.0
        %2413 = vmatpush1.msra.mxu0 0.0
        %2414 = vmatprep.subr.mxu0 0.0
        %2415 = vmatpush1.msra.mxu0 0.0
        %2416 = vmatprep.subr.mxu0 0.0
        %2417 = vmatpush1.msra.mxu0 0.0
        %2418 = vmatprep.subr.mxu0 0.0
        %2419 = vmatpush1.msra.mxu0 0.0
        %2420 = vmatprep.subr.mxu0 0.0
        %2421 = vmatpush1.msra.mxu0 0.0
        %2422 = vmatprep.subr.mxu0 0.0
        %2423 = vmatpush1.msra.mxu0 0.0
        %2424 = vmatprep.subr.mxu0 0.0
        %2425 = vmatpush1.msra.mxu0 0.0
        %2426 = vmatprep.subr.mxu0 0.0
        %2427 = vmatpush1.msra.mxu0 0.0
        %2428 = vmatprep.subr.mxu0 0.0
        %2429 = vmatpush1.msra.mxu0 0.0
        %2430 = vmatprep.subr.mxu0 0.0
        %2431 = vmatpush1.msra.mxu0 0.0
        %2432 = vmatprep.subr.mxu0 0.0
        %2433 = vmatpush1.msra.mxu0 0.0
        %2434 = vmatprep.subr.mxu0 0.0
        %2435 = vmatpush1.msra.mxu0 0.0
        %2436 = vmatprep.subr.mxu0 0.0
        %2437 = vmatpush1.msra.mxu0 0.0
        %2438 = vmatprep.subr.mxu0 0.0
        %2439 = vmatpush1.msra.mxu0 0.0
        %2440 = vmatprep.subr.mxu0 0.0
        %2441 = vmatpush1.msra.mxu0 0.0
        %2442 = vmatprep.subr.mxu0 0.0
        %2443 = vmatpush1.msra.mxu0 0.0
        %2444 = vmatprep.subr.mxu0 0.0
        %2445 = vmatpush1.msra.mxu0 0.0
        %2446 = vmatprep.subr.mxu0 0.0
        %2447 = vmatpush1.msra.mxu0 0.0
        %2448 = vmatprep.subr.mxu0 0.0
        %2449 = vmatpush1.msra.mxu0 0.0
        %2450 = vmatprep.subr.mxu0 0.0
        %2451 = vmatpush1.msra.mxu0 0.0
        %2452 = vmatprep.mubr.f32.mxu0 0.0
        %2453 = vmatmul.mubr.f32.gmra.mrb[0].mxu0 %v2362
        %v2454 = vpop.f32.mrb[0].mxu0
        %v2455 = vadd.f32 %v2318, %v2454
        %v2456 = vpop.f32.mrb[0].mxu0
        %2457 = vmatprep.mubr.f32.mxu0 0.0
        %2458 = vmatmul.mubr.f32.gmra.mrb[0].mxu0 %v2365
        %v2459 = vpop.f32.mrb[0].mxu0
        %v2460 = vadd.f32 %v2323, %v2459
        %v2461 = vpop.f32.mrb[0].mxu0
        %2462 = vmatprep.mubr.f32.mxu0 0.0
        %2463 = vmatmul.mubr.f32.gmra.mrb[0].mxu0 %v2368
        %v2464 = vpop.f32.mrb[0].mxu0
        %v2465 = vadd.f32 %v2328, %v2464
        %v2466 = vpop.f32.mrb[0].mxu0
        %2467 = vmatprep.mubr.f32.mxu0 0.0
        %2468 = vmatmul.mubr.f32.gmra.mrb[0].mxu0 %v2371
        %v2469 = vpop.f32.mrb[0].mxu0
        %v2470 = vadd.f32 %v2333, %v2469
        %v2471 = vpop.f32.mrb[0].mxu0
        %2472 = vmatprep.mubr.f32.mxu0 0.0
        %2473 = vmatmul.mubr.f32.gmra.mrb[0].mxu0 %v2374
        %v2474 = vpop.f32.mrb[0].mxu0
        %v2475 = vadd.f32 %v2338, %v2474
        %v2476 = vpop.f32.mrb[0].mxu0
        %2477 = vmatprep.mubr.f32.mxu0 0.0
        %2478 = vmatmul.mubr.f32.gmra.mrb[0].mxu0 %v2377
        %v2479 = vpop.f32.mrb[0].mxu0
        %v2480 = vadd.f32 %v2343, %v2479
        %v2481 = vpop.f32.mrb[0].mxu0
        %2482 = vmatprep.mubr.f32.mxu0 0.0
        %2483 = vmatmul.mubr.f32.gmra.mrb[0].mxu0 %v2380
        %v2484 = vpop.f32.mrb[0].mxu0
        %v2485 = vadd.f32 %v2348, %v2484
        %v2486 = vpop.f32.mrb[0].mxu0
        %2487 = vmatprep.mubr.f32.mxu0 0.0
        %2488 = vmatmul.mubr.f32.gmra.mrb[0].mxu0 %v2383
        %v2489 = vpop.f32.mrb[0].mxu0
        %v2490 = vadd.f32 %v2353, %v2489
        %v2491 = vpop.f32.mrb[0].mxu0
        %2492 = vmatprep.mubr.f32.mxu0 0.0
        %2493 = vmatmul.mubr.f32.gmra.mrb[0].mxu0 %v2386
        %v2494 = vpop.f32.mrb[0].mxu0
        %v2495 = vadd.f32 %v2358, %v2494
        %v2496 = vpop.f32.mrb[0].mxu0
        %2497 = vdwg.mxu0
        %v2498 = vld [vmem:[%s2 + $0x1f8] sm:$0xff]
        %v2499 = vld [vmem:[%s2 + $0x200] sm:$0xff]
        %v2500 = vld [vmem:[%s2 + $0x208] sm:$0xff]
        %v2501 = vld [vmem:[%s2 + $0x210] sm:$0xff]
        %v2502 = vld [vmem:[%s2 + $0x218] sm:$0xff]
        %v2503 = vld [vmem:[%s2 + $0x220] sm:$0xff]
        %v2504 = vld [vmem:[%s2 + $0x228] sm:$0xff]
        %v2505 = vld [vmem:[%s2 + $0x230] sm:$0xff]
        %v2506 = vld [vmem:[%s2 + $0x238] sm:$0xff]
        %2508 = vset.pattern.permute.xlu0 0
        %2509 = vperm.xlu0 %2508, %v2498
        %v2510 = vpop.permute.xlu0 %2509
        %2513 = vset.pattern.permute.xlu0 0
        %2514 = vperm.xlu0 %2513, %v2499
        %v2515 = vpop.permute.xlu0 %2514
        %2518 = vset.pattern.permute.xlu0 0
        %2519 = vperm.xlu0 %2518, %v2500
        %v2520 = vpop.permute.xlu0 %2519
        %2523 = vset.pattern.permute.xlu0 0
        %2524 = vperm.xlu0 %2523, %v2501
        %v2525 = vpop.permute.xlu0 %2524
        %2528 = vset.pattern.permute.xlu0 0
        %2529 = vperm.xlu0 %2528, %v2502
        %v2530 = vpop.permute.xlu0 %2529
        %2533 = vset.pattern.permute.xlu0 0
        %2534 = vperm.xlu0 %2533, %v2503
        %v2535 = vpop.permute.xlu0 %2534
        %2538 = vset.pattern.permute.xlu0 0
        %2539 = vperm.xlu0 %2538, %v2504
        %v2540 = vpop.permute.xlu0 %2539
        %2543 = vset.pattern.permute.xlu0 0
        %2544 = vperm.xlu0 %2543, %v2505
        %v2545 = vpop.permute.xlu0 %2544
        %2548 = vset.pattern.permute.xlu0 0
        %2549 = vperm.xlu0 %2548, %v2506
        %v2550 = vpop.permute.xlu0 %2549
        %v2552 = vadd.f32 %v2455, %v2510
        %v2553 = vadd.f32 %v2460, %v2515
        %v2554 = vadd.f32 %v2465, %v2520
        %v2555 = vadd.f32 %v2470, %v2525
        %v2556 = vadd.f32 %v2475, %v2530
        %v2557 = vadd.f32 %v2480, %v2535
        %v2558 = vadd.f32 %v2485, %v2540
        %v2559 = vadd.f32 %v2490, %v2545
        %v2560 = vadd.f32 %v2495, %v2550
        %2561 = vst [vmem:[%s249] sm:$0xff] %v2552
        %2562 = vst [vmem:[%s249 + $0x8] sm:$0xff] %v2553
        %2563 = vst [vmem:[%s249 + $0x10] sm:$0xff] %v2554
        %2564 = vst [vmem:[%s249 + $0x18] sm:$0xff] %v2555
        %2565 = vst [vmem:[%s249 + $0x20] sm:$0xff] %v2556
        %2566 = vst [vmem:[%s249 + $0x28] sm:$0xff] %v2557
        %2567 = vst [vmem:[%s249 + $0x30] sm:$0xff] %v2558
        %2568 = vst [vmem:[%s249 + $0x38] sm:$0xff] %v2559
        %2569 = vst [vmem:[%s249 + $0x40] sm:$0xff] %v2560
        %s2570 = sand.u32 %s94, 1
        %s2571 = scalar_lea.sflag [#allocation5], %s2570
        %s2572 = sand.u32 %s94, 1
        %s2573 = smul.addr %s2572, 72
        %s2574 = scalar_lea.vmem [#allocation6], %s2573
        // Predicated region
        $region75: #{tpu_custom_call.1} parent=65 // pred_check
          %p2575 = pneg %p104
        $region76: #{tpu_custom_call.1} parent=65 // pred_check_branch
          %2577 = sbr.rel (%p2575) target = $region78
        $region77: #{tpu_custom_call.1} parent=65 // pred_region
          %s2579 = ssub.s32 1152, 1152
          %2580 = vsyncadd %s2571, %s2579
          %s2581 = smul.addr %s18, 128
          %s2582 = scalar_lea.hbm %s3, %s2581
          %s2583 = sshll.u32 %s2574, 4
          %s2584 = int_to_ptr.vmem [resolvable:$true] %s2583
          %2589 = dma.vmem_to_hbm [thread:$0]  %s2584, 1152, %s2582, %s2571, 128, 256, 8
        $region78: #{tpu_custom_call.1} parent=65 // pred_fallthru
          _
      $region66: #{tpu_custom_call.1} parent=5 // pred_fallthru
        _
      %p2590 = scmp.le.s32.totalorder 2, %s13
      // Predicated region
      $region79: #{tpu_custom_call.1} parent=5 // pred_check
        %p2591 = pneg %p2590
      $region80: #{tpu_custom_call.1} parent=5 // pred_check_branch
        %2593 = sbr.rel (%p2591) target = $region82
      $region81: #{tpu_custom_call.1} parent=5 // pred_region
        %s2594 = ssub.s32 %s13, 2
        // Predicated region
        $region83: #{tpu_custom_call.1} parent=81 // pred_check
          %p2595 = pneg %p110
        $region84: #{tpu_custom_call.1} parent=81 // pred_check_branch
          %2597 = sbr.rel (%p2595) target = $region86
        $region85: #{tpu_custom_call.1} parent=81 // pred_region
          %s2598 = sand.u32 %s95, 1
          %s2599 = scalar_lea.sflag [#allocation5], %s2598
          %s2600 = sand.u32 %s95, 1
          %s2601 = smul.addr %s2600, 72
          %s2602 = scalar_lea.vmem [#allocation6], %s2601
          %2603 = dma.done %s2599, 1152
        $region86: #{tpu_custom_call.1} parent=81 // pred_fallthru
          _
      $region82: #{tpu_custom_call.1} parent=5 // pred_fallthru
        _
    $region6: #{tpu_custom_call.1} parent=1 // loop_footer
      %s17 = sadd.s32 1, %s13
    $region7: #{tpu_custom_call.1} parent=1 // loop_footer_branch
      %12 = sbr.rel target = $region3
    $region8: #{tpu_custom_call.1} parent=1 // loop_exit
      _
    %2604 = vsyncpa [#allocation4], 1
    %s2605 = scalar_lea.sflag [#allocation4], 1
    %2606 = vsyncpa %s2605, 1
    %2607 = vsyncpa [#allocation5], 1
    %s2608 = scalar_lea.sflag [#allocation5], 1
    %2609 = vsyncpa %s2608, 1

</llo_original>
